<compile_context>
chip_gen: v5e
topology: v5e:2x2
jax: 0.10.0
libtpu: 0.0.40
codegen_flags: <defaults>
</compile_context>

<pallas_src>
import jax
import jax.numpy as jnp
import numpy as np
from jax.experimental import pallas as pl
from jax.experimental.pallas import tpu as pltpu


# ----------------------------- Pallas kernel --------------------------------
def _proj_head_kernel(x_ref, w1_ref, b1_ref, w2_ref, b2_ref, protos_t_ref, out_ref):
    x = x_ref[...]                                                    # (TM, Cin_p) bf16
    # conv1x1 (+ eval-BN folded into w1/b1) + ReLU, f32 accumulation.
    h = jnp.dot(x, w1_ref[...], preferred_element_type=jnp.float32)
    h = jnp.maximum(h + b1_ref[...], 0.0)
    # conv1x1 -> proj_dim, f32 accumulation.
    emb = jnp.dot(h.astype(jnp.bfloat16), w2_ref[...],
                  preferred_element_type=jnp.float32) + b2_ref[...]
    # F.normalize(p=2, dim=channel): v / max(||v||, 1e-12).  The per-row scale is
    # applied after the prototype matmul, in f32 (identical result, better
    # precision than scaling the bf16 emb).
    sumsq = jnp.sum(emb * emb, axis=-1, keepdims=True)                # (TM, 1)
    inv = jax.lax.rsqrt(jnp.maximum(sumsq, 1e-24))
    # einsum('bchw, nc -> bnhw') == rows @ protos^T (single lane-dense output).
    logits = jnp.dot(emb.astype(jnp.bfloat16), protos_t_ref[...],
                     preferred_element_type=jnp.float32)
    # TODO(synk): emit bf16 logits if downstream tolerates it (halves output DMA).
    out_ref[...] = logits * inv


def run_proj_and_logits(rows, w1, b1, w2, b2, protos_t, *, tile_m):
    """rows: (M_pad, cin_p) bf16, weights already folded/padded/cast.
    Returns (M_pad, ntot_p) f32 unified logits."""
    M, cin_p = rows.shape
    d_p = w2.shape[1]
    ntot_p = protos_t.shape[1]
    assert M % tile_m == 0 and tile_m % 8 == 0

    # Grid-invariant operands -> full-array VMEM residents (single-buffered).
    vmem_full = pl.BlockSpec(memory_space=pltpu.MemorySpace.VMEM)

    flops = 2 * M * (cin_p * cin_p + cin_p * d_p + d_p * ntot_p)
    bytes_accessed = (M * (2 * cin_p + 4 * ntot_p)
                      + 2 * (cin_p * cin_p + cin_p * d_p + d_p * ntot_p))
    cost = pl.CostEstimate(flops=int(flops), transcendentals=int(M),
                           bytes_accessed=int(bytes_accessed))

    return pl.pallas_call(
        _proj_head_kernel,
        out_shape=jax.ShapeDtypeStruct((M, ntot_p), jnp.float32),
        grid=(M // tile_m,),
        in_specs=[
            pl.BlockSpec((tile_m, cin_p), lambda i: (i, 0)),   # feature rows (pipelined)
            vmem_full,                                         # W1_eff^T (BN folded)
            vmem_full,                                         # b1_eff
            vmem_full,                                         # W2^T
            vmem_full,                                         # b2
            vmem_full,                                         # concat prototypes^T
        ],
        out_specs=pl.BlockSpec((tile_m, ntot_p), lambda i: (i, 0)),
        compiler_params=pltpu.CompilerParams(
            dimension_semantics=("parallel",),
            vmem_limit_bytes=48 * 1024 * 1024,
        ),
        cost_estimate=cost,
    )(rows, w1, b1, w2, b2, protos_t)


# ------------------------------ JAX glue -------------------------------------
def _round_up(x, m):
    return (x + m - 1) // m * m


def _choose_tile_m(M, max_tile=1024):
    # Ensure >=2 grid steps whenever possible so "parallel" can shard the grid
    # across both TensorCores on v7x; keep the tile a multiple of 8 sublanes.
    half = _round_up(max((M + 1) // 2, 8), 8)
    return max(8, min(max_tile, half))


def _nk_align():
    # v6e/v7x MXU tiles are 256 wide -> pad D / total_cats to 256 there; 128 is
    # already optimal for v5e (4x128x128 MXU).
    try:
        kind = jax.devices()[0].device_kind.lower()
    except Exception:
        return 128
    return 256 if ("v6" in kind or "v7" in kind) else 128


def bilinear_resize_align_corners_nhwc(x, out_h, out_w):
    """F.interpolate(mode='bilinear', align_corners=True) for NHWC input."""
    B, h, w, C = x.shape
    src_y = (jnp.zeros((out_h,), jnp.float32) if h == 1
             else jnp.arange(out_h, dtype=jnp.float32) * (h - 1) / (out_h - 1))
    src_x = (jnp.zeros((out_w,), jnp.float32) if w == 1
             else jnp.arange(out_w, dtype=jnp.float32) * (w - 1) / (out_w - 1))
    y0 = jnp.floor(src_y).astype(jnp.int32)
    y1 = jnp.minimum(y0 + 1, h - 1)
    x0 = jnp.floor(src_x).astype(jnp.int32)
    x1 = jnp.minimum(x0 + 1, w - 1)
    wy = (src_y - y0.astype(jnp.float32))[None, :, None, None]
    wx = (src_x - x0.astype(jnp.float32))[None, None, :, None]
    g = lambda yi, xi: x[:, yi, :, :][:, :, xi, :]
    top = g(y0, x0) * (1.0 - wx) + g(y0, x1) * wx
    bot = g(y1, x0) * (1.0 - wx) + g(y1, x1) * wx
    return top * (1.0 - wy) + bot * wy


def hrnet_w48_mulhead_forward(xs, params, dataset_ids=0, *, max_tile_m=1024):
    """Eval-mode forward of HRNet_W48_mulhead (dataset_ids is a static int)."""
    B, _, H, W = xs[0].shape

    # NHWC end-to-end; cast each branch to bf16 right after its (f32) upsample so
    # the concat/reshape/pad is a single bf16 pass over the full-res feature map.
    nhwc = [t.transpose(0, 2, 3, 1) for t in xs]
    branches = [nhwc[0].astype(jnp.bfloat16)] + [
        bilinear_resize_align_corners_nhwc(t, H, W).astype(jnp.bfloat16)
        for t in nhwc[1:]
    ]
    cin = sum(b.shape[-1] for b in branches)

    datasets_cats = [p.shape[0] for p in params["unify_prototype"]]
    D = params["w2"].shape[0]
    ntot = sum(datasets_cats)
    off = sum(datasets_cats[:dataset_ids])
    n_i = datasets_cats[dataset_ids]

    # Pad matmul dims: cin to 128; D / total_cats to the MXU width (256 on v6e/v7x).
    nk = _nk_align()
    cin_p = _round_up(cin, 128)
    d_p = _round_up(D, nk)
    ntot_p = _round_up(ntot, nk)

    # Fold eval-mode BatchNorm into conv1 weights/bias.
    eps = 1e-5
    scale = params["bn_gamma"] / jnp.sqrt(params["bn_var"] + eps)      # (cin,)
    w1_eff = params["w1"].T * scale[None, :]                           # (cin_in, cin_out)
    b1_eff = (params["b1"] - params["bn_mean"]) * scale + params["bn_beta"]

    pad2 = lambda a, r, c: jnp.pad(a, ((0, r - a.shape[0]), (0, c - a.shape[1])))
    w1_p = pad2(w1_eff, cin_p, cin_p).astype(jnp.bfloat16)
    b1_p = jnp.pad(b1_eff, (0, cin_p - cin)).reshape(1, cin_p).astype(jnp.float32)
    w2_p = pad2(params["w2"].T, cin_p, d_p).astype(jnp.bfloat16)
    b2_p = jnp.pad(params["b2"], (0, d_p - D)).reshape(1, d_p).astype(jnp.float32)
    protos_all = jnp.concatenate(params["unify_prototype"], axis=0)    # (ntot, D)
    protos_t_p = pad2(protos_all.T, d_p, ntot_p).astype(jnp.bfloat16)

    # Per-pixel rows in bf16: concat branch rows + channel zero-pad in one pass.
    M = B * H * W
    tile_m = _choose_tile_m(M, max_tile_m)
    M_pad = _round_up(M, tile_m)
    row_parts = [b.reshape(M, b.shape[-1]) for b in branches]
    if cin_p > cin:
        row_parts.append(jnp.zeros((M, cin_p - cin), jnp.bfloat16))
    rows = jnp.concatenate(row_parts, axis=-1)                         # (M, cin_p) bf16
    if M_pad > M:
        rows = jnp.pad(rows, ((0, M_pad - M), (0, 0)))

    uni_rows = run_proj_and_logits(rows, w1_p, b1_p, w2_p, b2_p, protos_t_p,
                                   tile_m=tile_m)

    # Single reshape+transpose to bnhw; per-dataset logits are a channel slice.
    uni_logits = uni_rows[:M, :ntot].reshape(B, H, W, ntot).transpose(0, 3, 1, 2)
    logits = uni_logits[:, off:off + n_i]
    return {"logits": [logits], "uni_logits": [uni_logits]}


# ------------------------- deterministic params -------------------------------
def make_params(key, cin, proj_dim, datasets_cats):
    ks = jax.random.split(key, 4 + len(datasets_cats))
    # Conv2d weights: kaiming_normal_(mode='fan_out') -> std = sqrt(2 / fan_out)
    w1 = jax.random.normal(ks[0], (cin, cin), jnp.float32) * np.sqrt(2.0 / cin)
    b1 = jnp.zeros((cin,), jnp.float32)
    w2 = jax.random.normal(ks[1], (proj_dim, cin), jnp.float32) * np.sqrt(2.0 / proj_dim)
    b2 = jnp.zeros((proj_dim,), jnp.float32)
    # BatchNorm (torchsyncbn) defaults (init_weights does not touch them)
    bn_gamma = jnp.ones((cin,), jnp.float32)
    bn_beta = jnp.zeros((cin,), jnp.float32)
    bn_mean = jnp.zeros((cin,), jnp.float32)
    bn_var = jnp.ones((cin,), jnp.float32)
    # unify_prototype: trunc_normal_(std=0.02)
    protos = [jax.random.truncated_normal(ks[4 + i], -2.0, 2.0, (n, proj_dim),
                                          jnp.float32) * 0.02
              for i, n in enumerate(datasets_cats)]
    # TODO(synk): bipartite_graphs / aux_prototype are unused in eval forward() -> omitted.
    return dict(w1=w1, b1=b1, w2=w2, b2=b2,
                bn_gamma=bn_gamma, bn_beta=bn_beta, bn_mean=bn_mean, bn_var=bn_var,
                unify_prototype=protos)


# ------------------------------ reference -------------------------------------
def bilinear_resize_align_corners_nchw(x, out_h, out_w):
    B, C, h, w = x.shape
    src_y = (jnp.zeros((out_h,), jnp.float32) if h == 1
             else jnp.arange(out_h, dtype=jnp.float32) * (h - 1) / (out_h - 1))
    src_x = (jnp.zeros((out_w,), jnp.float32) if w == 1
             else jnp.arange(out_w, dtype=jnp.float32) * (w - 1) / (out_w - 1))
    y0 = jnp.floor(src_y).astype(jnp.int32)
    y1 = jnp.minimum(y0 + 1, h - 1)
    x0 = jnp.floor(src_x).astype(jnp.int32)
    x1 = jnp.minimum(x0 + 1, w - 1)
    wy = (src_y - y0.astype(jnp.float32))[None, None, :, None]
    wx = (src_x - x0.astype(jnp.float32))[None, None, None, :]
    g = lambda yi, xi: x[:, :, yi, :][:, :, :, xi]
    top = g(y0, x0) * (1.0 - wx) + g(y0, x1) * wx
    bot = g(y1, x0) * (1.0 - wx) + g(y1, x1) * wx
    return top * (1.0 - wy) + bot * wy


def reference_forward(xs, params, dataset_ids=0):
    B, _, H, W = xs[0].shape
    feats = jnp.concatenate(
        [xs[0]] + [bilinear_resize_align_corners_nchw(t, H, W) for t in xs[1:]], axis=1)
    cin = feats.shape[1]
    rows = feats.transpose(0, 2, 3, 1).reshape(-1, cin)
    hp = jax.lax.Precision.HIGHEST
    h = jnp.dot(rows, params["w1"].T, precision=hp) + params["b1"]
    eps = 1e-5
    h = (h - params["bn_mean"]) / jnp.sqrt(params["bn_var"] + eps) * params["bn_gamma"] + params["bn_beta"]
    h = jnp.maximum(h, 0.0)
    emb = jnp.dot(h, params["w2"].T, precision=hp) + params["b2"]
    emb = emb / jnp.maximum(jnp.sqrt(jnp.sum(emb * emb, -1, keepdims=True)), 1e-12)
    proto_i = params["unify_prototype"][dataset_ids]
    protos_all = jnp.concatenate(params["unify_prototype"], axis=0)
    lg = jnp.dot(emb, proto_i.T, precision=hp)
    ug = jnp.dot(emb, protos_all.T, precision=hp)
    to_bnhw = lambda r: r.reshape(B, H, W, -1).transpose(0, 3, 1, 2)
    return to_bnhw(lg), to_bnhw(ug)


# -------------------------------- main -----------------------------------------
if __name__ == "__main__":
    key = jax.random.PRNGKey(0)
    B, H, W = 2, 16, 16
    branch_channels = [4, 8, 16, 32]            # HRNet-style multi-resolution branches
    cin = sum(branch_channels)                  # 60
    proj_dim = 32                               # output_feat_dim
    datasets_cats = [5, 7]                      # n_datasets = 2, total_cats = 12

    kx, kp = jax.random.split(key)
    xkeys = jax.random.split(kx, 4)
    xs = [jax.random.normal(xkeys[i],
                            (B, branch_channels[i], H // (2 ** i), W // (2 ** i)),
                            jnp.float32)
          for i in range(4)]

    params = make_params(kp, cin, proj_dim, datasets_cats)

    out = hrnet_w48_mulhead_forward(xs, params, dataset_ids=0)
    logits = jax.block_until_ready(out["logits"][0])
    uni_logits = jax.block_until_ready(out["uni_logits"][0])

    ref_logits, ref_uni = reference_forward(xs, params, dataset_ids=0)
    assert logits.shape == (B, datasets_cats[0], H, W)
    assert uni_logits.shape == (B, sum(datasets_cats), H, W)
    np.testing.assert_allclose(np.asarray(logits), np.asarray(ref_logits),
                               atol=2e-2, rtol=2e-2)
    np.testing.assert_allclose(np.asarray(uni_logits), np.asarray(ref_uni),
                               atol=2e-2, rtol=2e-2)

    print("KERNEL_OK")
</pallas_src>

<mosaic_0001>
module attributes {stable_mosaic.version = 11 : i64} {
  func.func @_proj_head_kernel(%arg0: i32, %arg1: memref<256x128xbf16, #tpu.memory_space<vmem>>, %arg2: memref<128x128xbf16, #tpu.memory_space<vmem>>, %arg3: memref<1x128xf32, #tpu.memory_space<vmem>>, %arg4: memref<128x128xbf16, #tpu.memory_space<vmem>>, %arg5: memref<1x128xf32, #tpu.memory_space<vmem>>, %arg6: memref<128x128xbf16, #tpu.memory_space<vmem>>, %arg7: memref<256x128xf32, #tpu.memory_space<vmem>>) attributes {dimension_semantics = [#tpu.dimension_semantics<parallel>], iteration_bounds = array<i64: 2>, scalar_prefetch = 0 : i64, scratch_operands = 0 : i64, tpu.core_type = #tpu.core_type<tc>, window_params = [{transform_indices = @transform_0, window_bounds = array<i64: 256, 128>}, {pipeline_mode = #tpu.pipeline_mode<synchronous>, transform_indices = @transform_1, window_bounds = array<i64: 128, 128>}, {pipeline_mode = #tpu.pipeline_mode<synchronous>, transform_indices = @transform_2, window_bounds = array<i64: 1, 128>}, {pipeline_mode = #tpu.pipeline_mode<synchronous>, transform_indices = @transform_3, window_bounds = array<i64: 128, 128>}, {pipeline_mode = #tpu.pipeline_mode<synchronous>, transform_indices = @transform_4, window_bounds = array<i64: 1, 128>}, {pipeline_mode = #tpu.pipeline_mode<synchronous>, transform_indices = @transform_5, window_bounds = array<i64: 128, 128>}, {transform_indices = @transform_6, window_bounds = array<i64: 256, 128>}]} {
    %c0 = arith.constant 0 : index
    %c0_0 = arith.constant 0 : index
    %0 = vector.load %arg1[%c0, %c0_0] : memref<256x128xbf16, #tpu.memory_space<vmem>>, vector<256x128xbf16>
    %c0_1 = arith.constant 0 : index
    %c0_2 = arith.constant 0 : index
    %1 = vector.load %arg2[%c0_1, %c0_2] : memref<128x128xbf16, #tpu.memory_space<vmem>>, vector<128x128xbf16>
    %cst = arith.constant dense<0.000000e+00> : vector<256x128xf32>
    %2 = tpu.matmul %0, %1, %cst {dimension_numbers = #tpu.dot_dimension_numbers<[1], [0], [0], [1], [0, 0, 1, 1], [], []>} : vector<256x128xbf16>, vector<128x128xbf16>, vector<256x128xf32> -> vector<256x128xf32>
    %c0_3 = arith.constant 0 : index
    %c0_4 = arith.constant 0 : index
    %3 = vector.load %arg3[%c0_3, %c0_4] : memref<1x128xf32, #tpu.memory_space<vmem>>, vector<1x128xf32>
    %4 = vector.broadcast %3 : vector<1x128xf32> to vector<256x128xf32>
    %5 = arith.addf %2, %4 : vector<256x128xf32>
    %cst_5 = arith.constant 0.000000e+00 : f32
    %6 = vector.broadcast %cst_5 : f32 to vector<256x128xf32>
    %7 = arith.maximumf %5, %6 : vector<256x128xf32>
    %8 = arith.truncf %7 : vector<256x128xf32> to vector<256x128xbf16>
    %c0_6 = arith.constant 0 : index
    %c0_7 = arith.constant 0 : index
    %9 = vector.load %arg4[%c0_6, %c0_7] : memref<128x128xbf16, #tpu.memory_space<vmem>>, vector<128x128xbf16>
    %cst_8 = arith.constant dense<0.000000e+00> : vector<256x128xf32>
    %10 = tpu.matmul %8, %9, %cst_8 {dimension_numbers = #tpu.dot_dimension_numbers<[1], [0], [0], [1], [0, 0, 1, 1], [], []>} : vector<256x128xbf16>, vector<128x128xbf16>, vector<256x128xf32> -> vector<256x128xf32>
    %c0_9 = arith.constant 0 : index
    %c0_10 = arith.constant 0 : index
    %11 = vector.load %arg5[%c0_9, %c0_10] : memref<1x128xf32, #tpu.memory_space<vmem>>, vector<1x128xf32>
    %12 = vector.broadcast %11 : vector<1x128xf32> to vector<256x128xf32>
    %13 = arith.addf %10, %12 : vector<256x128xf32>
    %14 = arith.mulf %13, %13 : vector<256x128xf32>
    %cst_11 = arith.constant dense<0.000000e+00> : vector<256xf32>
    %15 = vector.multi_reduction <add>, %14, %cst_11 [1] : vector<256x128xf32> to vector<256xf32>
    %16 = vector.shape_cast %15 : vector<256xf32> to vector<256x1xf32>
    %cst_12 = arith.constant 1.000000e-24 : f32
    %17 = vector.broadcast %cst_12 : f32 to vector<256x1xf32>
    %18 = arith.maximumf %16, %17 : vector<256x1xf32>
    %19 = math.rsqrt %18 : vector<256x1xf32>
    %20 = arith.truncf %13 : vector<256x128xf32> to vector<256x128xbf16>
    %c0_13 = arith.constant 0 : index
    %c0_14 = arith.constant 0 : index
    %21 = vector.load %arg6[%c0_13, %c0_14] : memref<128x128xbf16, #tpu.memory_space<vmem>>, vector<128x128xbf16>
    %cst_15 = arith.constant dense<0.000000e+00> : vector<256x128xf32>
    %22 = tpu.matmul %20, %21, %cst_15 {dimension_numbers = #tpu.dot_dimension_numbers<[1], [0], [0], [1], [0, 0, 1, 1], [], []>} : vector<256x128xbf16>, vector<128x128xbf16>, vector<256x128xf32> -> vector<256x128xf32>
    %23 = vector.broadcast %19 : vector<256x1xf32> to vector<256x128xf32>
    %24 = arith.mulf %22, %23 : vector<256x128xf32>
    %c0_16 = arith.constant 0 : index
    %c0_17 = arith.constant 0 : index
    %25 = vector.load %arg7[%c0_16, %c0_17] : memref<256x128xf32, #tpu.memory_space<vmem>>, vector<256x128xf32>
    tpu.vector_store %arg7[%c0_16, %c0_17], %24 {strides = array<i32>} : memref<256x128xf32, #tpu.memory_space<vmem>>, vector<256x128xf32>,
    return
  }
  func.func @transform_0(%arg0: i32) -> (i32, i32) {
    %c0_i32 = arith.constant 0 : i32
    %c0_i32_0 = arith.constant 0 : i32
    return %arg0, %c0_i32 : i32, i32
  }
  func.func @transform_1(%arg0: i32) -> (i32, i32) {
    %c0_i32 = arith.constant 0 : i32
    %c0_i32_0 = arith.constant 0 : i32
    %c0_i32_1 = arith.constant 0 : i32
    return %c0_i32, %c0_i32_0 : i32, i32
  }
  func.func @transform_2(%arg0: i32) -> (i32, i32) {
    %c0_i32 = arith.constant 0 : i32
    %c0_i32_0 = arith.constant 0 : i32
    %c0_i32_1 = arith.constant 0 : i32
    return %c0_i32, %c0_i32_0 : i32, i32
  }
  func.func @transform_3(%arg0: i32) -> (i32, i32) {
    %c0_i32 = arith.constant 0 : i32
    %c0_i32_0 = arith.constant 0 : i32
    %c0_i32_1 = arith.constant 0 : i32
    return %c0_i32, %c0_i32_0 : i32, i32
  }
  func.func @transform_4(%arg0: i32) -> (i32, i32) {
    %c0_i32 = arith.constant 0 : i32
    %c0_i32_0 = arith.constant 0 : i32
    %c0_i32_1 = arith.constant 0 : i32
    return %c0_i32, %c0_i32_0 : i32, i32
  }
  func.func @transform_5(%arg0: i32) -> (i32, i32) {
    %c0_i32 = arith.constant 0 : i32
    %c0_i32_0 = arith.constant 0 : i32
    %c0_i32_1 = arith.constant 0 : i32
    return %c0_i32, %c0_i32_0 : i32, i32
  }
  func.func @transform_6(%arg0: i32) -> (i32, i32) {
    %c0_i32 = arith.constant 0 : i32
    %c0_i32_0 = arith.constant 0 : i32
    return %arg0, %c0_i32 : i32, i32
  }
}

</mosaic_0001>

<llo_original>
// kernel: tpu_custom_call.1
$region0: #{tpu_custom_call.1}
  #allocation0 [shape = 'u32[]', space=smem, size = 0x4, offset = 0x4, fixed_abs, tag = 'smem constant byte address 0x4 - core index']
  #allocation1 [shape = 'u32[72,128]{1,0:T(1,128)}', space=vmem, size = 0x9000, scoped, tag = 'internal scratch']
  %s0 = inlined_call_operand.hbm [shape: bf16[512,128], index: 0, kind: input, shape index: {}]
  %s1 = inlined_call_operand.hbm [shape: bf16[128,128], index: 1, kind: input, shape index: {}]
  %s2 = inlined_call_operand.vmem [shape: f32[1,128], index: 2, kind: input, shape index: {}]
  %s3 = inlined_call_operand.hbm [shape: bf16[128,128], index: 3, kind: input, shape index: {}]
  %s4 = inlined_call_operand.vmem [shape: f32[1,128], index: 4, kind: input, shape index: {}]
  %s5 = inlined_call_operand.hbm [shape: bf16[128,128], index: 5, kind: input, shape index: {}]
  %s6 = inlined_call_operand.hbm [shape: f32[512,128], index: 6, kind: output, shape index: {}]
  %s7 = sld [smem:[#allocation0]]
  $region73: #{tpu_custom_call.1} parent=0
    _
  %s9 = ssub.s32 1, %s7
  %s10 = scalar_select 0, %s9, %s7
  $region1: #{tpu_custom_call.1} parent=0
    #allocation2 [shape = 'u8[131072]{0}', space=vmem, size = 0x20000, scoped, tag = 'input window, operand 0']
    #allocation3 [shape = 's32[2]{0}', space=sflag, size = 0x8, scoped, tag = 'scoped memory for tpu_custom_call.1']
    #allocation4 [shape = 's32[2]{0}', space=sflag, size = 0x8, scoped, tag = 'scoped memory for tpu_custom_call.1']
    #allocation5 [shape = 'u8[32768]{0}', space=vmem, size = 0x8000, scoped, tag = 'input window, operand 1, single buffered']
    #allocation6 [shape = 's32[1]{0}', space=sflag, size = 0x4, scoped, tag = 'scoped memory for tpu_custom_call.1']
    #allocation7 [shape = 'u8[32768]{0}', space=vmem, size = 0x8000, scoped, tag = 'input window, operand 3, single buffered']
    #allocation8 [shape = 'u8[32768]{0}', space=vmem, size = 0x8000, scoped, tag = 'input window, operand 5, single buffered']
    #allocation9 [shape = 's32[1]{0}', space=sflag, size = 0x4, scoped, tag = 'scoped memory for tpu_custom_call.1']
    #allocation10 [shape = 'u8[262144]{0}', space=vmem, size = 0x40000, scoped, tag = 'output window, operand 0']
    %11 = vsyncpa [#allocation3], 0
    %s12 = scalar_lea.sflag [#allocation3], 1
    %13 = vsyncpa %s12, 0
    %14 = vsyncpa [#allocation6], 0
    %15 = vsyncpa [#allocation9], 0
    %16 = vsyncpa [#allocation4], 0
    %s17 = scalar_lea.sflag [#allocation4], 1
    %18 = vsyncpa %s17, 0
    loop: start=0, step=1, limit=4
    $region2: #{tpu_custom_call.1} parent=1 // loop_pre_header
      _
    $region3: #{tpu_custom_call.1} parent=1 // loop_header
      %s20 = sphi 0, %s24
      %p21 = scmp.ge.s32.totalorder %s20, 4
      %s30 = sphi 0, %s32
      %s33 = sphi 0, %s30
      %s34 = sphi 0, %s33
      %s50 = sphi 0, %s34
      %s54 = sphi 0, %s54
      %s56 = sphi 0, %s54
      %s57 = sphi 0, %s56
      %s71 = sphi 0, %s57
      %s75 = sphi 0, %s75
      %s77 = sphi 0, %s75
      %s78 = sphi 0, %s77
      %s92 = sphi 0, %s78
      %s96 = sphi 0, %s96
      %s98 = sphi 0, %s96
      %s99 = sphi 0, %s98
      %s113 = sphi 0, %s99
      %s117 = sphi 0, %s117
      %s119 = sphi 0, %s117
      %s120 = sphi 0, %s119
      %s134 = sphi 0, %s120
      %s138 = sphi 0, %s138
      %s140 = sphi 0, %s138
      %s141 = sphi 0, %s140
      %s155 = sphi 0, %s141
      %s161 = sphi 0, %s163
      %s164 = sphi 0, %s161
      %s165 = sphi 0, %s164
      %s181 = sphi 0, %s165
    $region4: #{tpu_custom_call.1} parent=1 // loop_header_branch
      %23 = sbr.rel (%p21) target = $region8
    $region5: #{tpu_custom_call.1} parent=1 // loop_body
      %s25 = ssub.s32 %s20, 1
      %s26 = ssub.s32 %s20, 2
      %s27 = sadd.s32 %s20, 1
      %s28 = ssub.s32 %s20, %s27
      %p29 = scmp.eq.s32.totalorder %s28, 0
      %s31 = sadd.s32 %s30, 1
      %s32 = scalar_select %p29, %s30, %s31
      %p35 = pneg %p29
      %p36 = scmp.eq.s32.totalorder %s20, 1
      %p37 = por %p35, %p36
      %p38 = scmp.ne.s32.totalorder %s30, %s33
      %p39 = scmp.eq.s32.totalorder %s20, 0
      %p40 = por %p38, %p39
      %p41 = scmp.ne.s32.totalorder %s30, %s33
      %p42 = scmp.eq.s32.totalorder %s25, 1
      %p43 = por %p41, %p42
      %p44 = scmp.ne.s32.totalorder %s33, %s34
      %p45 = scmp.eq.s32.totalorder %s25, 0
      %p46 = por %p44, %p45
      %p47 = scmp.ne.s32.totalorder %s33, %s34
      %p48 = scmp.eq.s32.totalorder %s26, 1
      %p49 = por %p47, %p48
      %p51 = scmp.ne.s32.totalorder %s34, %s50
      %p52 = scmp.eq.s32.totalorder %s26, 0
      %p53 = por %p51, %p52
      %s55 = sadd.s32 %s54, 1
      %p58 = scmp.eq.s32.totalorder %s20, 1
      %p59 = scmp.ne.s32.totalorder %s54, %s56
      %p60 = scmp.eq.s32.totalorder %s20, 0
      %p61 = por %p59, %p60
      %p62 = scmp.ne.s32.totalorder %s54, %s56
      %p63 = scmp.eq.s32.totalorder %s25, 1
      %p64 = por %p62, %p63
      %p65 = scmp.ne.s32.totalorder %s56, %s57
      %p66 = scmp.eq.s32.totalorder %s25, 0
      %p67 = por %p65, %p66
      %p68 = scmp.ne.s32.totalorder %s56, %s57
      %p69 = scmp.eq.s32.totalorder %s26, 1
      %p70 = por %p68, %p69
      %p72 = scmp.ne.s32.totalorder %s57, %s71
      %p73 = scmp.eq.s32.totalorder %s26, 0
      %p74 = por %p72, %p73
      %s76 = sadd.s32 %s75, 1
      %p79 = scmp.eq.s32.totalorder %s20, 1
      %p80 = scmp.ne.s32.totalorder %s75, %s77
      %p81 = scmp.eq.s32.totalorder %s20, 0
      %p82 = por %p80, %p81
      %p83 = scmp.ne.s32.totalorder %s75, %s77
      %p84 = scmp.eq.s32.totalorder %s25, 1
      %p85 = por %p83, %p84
      %p86 = scmp.ne.s32.totalorder %s77, %s78
      %p87 = scmp.eq.s32.totalorder %s25, 0
      %p88 = por %p86, %p87
      %p89 = scmp.ne.s32.totalorder %s77, %s78
      %p90 = scmp.eq.s32.totalorder %s26, 1
      %p91 = por %p89, %p90
      %p93 = scmp.ne.s32.totalorder %s78, %s92
      %p94 = scmp.eq.s32.totalorder %s26, 0
      %p95 = por %p93, %p94
      %s97 = sadd.s32 %s96, 1
      %p100 = scmp.eq.s32.totalorder %s20, 1
      %p101 = scmp.ne.s32.totalorder %s96, %s98
      %p102 = scmp.eq.s32.totalorder %s20, 0
      %p103 = por %p101, %p102
      %p104 = scmp.ne.s32.totalorder %s96, %s98
      %p105 = scmp.eq.s32.totalorder %s25, 1
      %p106 = por %p104, %p105
      %p107 = scmp.ne.s32.totalorder %s98, %s99
      %p108 = scmp.eq.s32.totalorder %s25, 0
      %p109 = por %p107, %p108
      %p110 = scmp.ne.s32.totalorder %s98, %s99
      %p111 = scmp.eq.s32.totalorder %s26, 1
      %p112 = por %p110, %p111
      %p114 = scmp.ne.s32.totalorder %s99, %s113
      %p115 = scmp.eq.s32.totalorder %s26, 0
      %p116 = por %p114, %p115
      %s118 = sadd.s32 %s117, 1
      %p121 = scmp.eq.s32.totalorder %s20, 1
      %p122 = scmp.ne.s32.totalorder %s117, %s119
      %p123 = scmp.eq.s32.totalorder %s20, 0
      %p124 = por %p122, %p123
      %p125 = scmp.ne.s32.totalorder %s117, %s119
      %p126 = scmp.eq.s32.totalorder %s25, 1
      %p127 = por %p125, %p126
      %p128 = scmp.ne.s32.totalorder %s119, %s120
      %p129 = scmp.eq.s32.totalorder %s25, 0
      %p130 = por %p128, %p129
      %p131 = scmp.ne.s32.totalorder %s119, %s120
      %p132 = scmp.eq.s32.totalorder %s26, 1
      %p133 = por %p131, %p132
      %p135 = scmp.ne.s32.totalorder %s120, %s134
      %p136 = scmp.eq.s32.totalorder %s26, 0
      %p137 = por %p135, %p136
      %s139 = sadd.s32 %s138, 1
      %p142 = scmp.eq.s32.totalorder %s20, 1
      %p143 = scmp.ne.s32.totalorder %s138, %s140
      %p144 = scmp.eq.s32.totalorder %s20, 0
      %p145 = por %p143, %p144
      %p146 = scmp.ne.s32.totalorder %s138, %s140
      %p147 = scmp.eq.s32.totalorder %s25, 1
      %p148 = por %p146, %p147
      %p149 = scmp.ne.s32.totalorder %s140, %s141
      %p150 = scmp.eq.s32.totalorder %s25, 0
      %p151 = por %p149, %p150
      %p152 = scmp.ne.s32.totalorder %s140, %s141
      %p153 = scmp.eq.s32.totalorder %s26, 1
      %p154 = por %p152, %p153
      %p156 = scmp.ne.s32.totalorder %s141, %s155
      %p157 = scmp.eq.s32.totalorder %s26, 0
      %p158 = por %p156, %p157
      %s159 = ssub.s32 %s20, %s27
      %p160 = scmp.eq.s32.totalorder %s159, 0
      %s162 = sadd.s32 %s161, 1
      %s163 = scalar_select %p160, %s161, %s162
      %p166 = pneg %p160
      %p167 = scmp.eq.s32.totalorder %s20, 1
      %p168 = por %p166, %p167
      %p169 = scmp.ne.s32.totalorder %s161, %s164
      %p170 = scmp.eq.s32.totalorder %s20, 0
      %p171 = por %p169, %p170
      %p172 = scmp.ne.s32.totalorder %s161, %s164
      %p173 = scmp.eq.s32.totalorder %s25, 1
      %p174 = por %p172, %p173
      %p175 = scmp.ne.s32.totalorder %s164, %s165
      %p176 = scmp.eq.s32.totalorder %s25, 0
      %p177 = por %p175, %p176
      %p178 = scmp.ne.s32.totalorder %s164, %s165
      %p179 = scmp.eq.s32.totalorder %s26, 1
      %p180 = por %p178, %p179
      %p182 = scmp.ne.s32.totalorder %s165, %s181
      %p183 = scmp.eq.s32.totalorder %s26, 0
      %p184 = por %p182, %p183
      %p185 = scmp.le.s32.totalorder 1, %s20
      %p186 = scmp.lt.s32.totalorder %s20, 3
      %p187 = pnand %p185, %p186
      %p188 = pneg %p187
      // Predicated region
      $region9: #{tpu_custom_call.1} parent=5 // pred_check
        _
      $region10: #{tpu_custom_call.1} parent=5 // pred_check_branch
        %190 = sbr.rel (%p187) target = $region12
      $region11: #{tpu_custom_call.1} parent=5 // pred_region
        %s191 = ssub.s32 %s20, 1
        // Predicated region
        $region13: #{tpu_custom_call.1} parent=11 // pred_check
          %p192 = pneg %p67
        $region14: #{tpu_custom_call.1} parent=11 // pred_check_branch
          %194 = sbr.rel (%p192) target = $region16
        $region15: #{tpu_custom_call.1} parent=11 // pred_region
          %196 = vsyncadd [#allocation6], 0
          %s197 = sshll.u32 %s1, 4
          %s198 = int_to_ptr.hbm [resolvable:$true] %s197
          %s199 = sshll.u32 [#allocation5], 4
          %s200 = int_to_ptr.vmem [resolvable:$true] %s199
          %205 = dma.hbm_to_vmem [thread:$0]  %s198, 1024, %s200, [#allocation6], 64, 64, 4
        $region16: #{tpu_custom_call.1} parent=11 // pred_fallthru
          _
        // Predicated region
        $region17: #{tpu_custom_call.1} parent=11 // pred_check
          %p206 = pneg %p88
        $region18: #{tpu_custom_call.1} parent=11 // pred_check_branch
          %208 = sbr.rel (%p206) target = $region20
        $region19: #{tpu_custom_call.1} parent=11 // pred_region
          _
        $region20: #{tpu_custom_call.1} parent=11 // pred_fallthru
          _
        // Predicated region
        $region21: #{tpu_custom_call.1} parent=11 // pred_check
          %p209 = pneg %p109
        $region22: #{tpu_custom_call.1} parent=11 // pred_check_branch
          %211 = sbr.rel (%p209) target = $region24
        $region23: #{tpu_custom_call.1} parent=11 // pred_region
          %213 = vsyncadd [#allocation6], 0
          %s214 = sshll.u32 %s3, 4
          %s215 = int_to_ptr.hbm [resolvable:$true] %s214
          %s216 = sshll.u32 [#allocation7], 4
          %s217 = int_to_ptr.vmem [resolvable:$true] %s216
          %222 = dma.hbm_to_vmem [thread:$0]  %s215, 1024, %s217, [#allocation6], 64, 64, 4
        $region24: #{tpu_custom_call.1} parent=11 // pred_fallthru
          _
        // Predicated region
        $region25: #{tpu_custom_call.1} parent=11 // pred_check
          %p223 = pneg %p130
        $region26: #{tpu_custom_call.1} parent=11 // pred_check_branch
          %225 = sbr.rel (%p223) target = $region28
        $region27: #{tpu_custom_call.1} parent=11 // pred_region
          _
        $region28: #{tpu_custom_call.1} parent=11 // pred_fallthru
          _
        // Predicated region
        $region29: #{tpu_custom_call.1} parent=11 // pred_check
          %p226 = pneg %p151
        $region30: #{tpu_custom_call.1} parent=11 // pred_check_branch
          %228 = sbr.rel (%p226) target = $region32
        $region31: #{tpu_custom_call.1} parent=11 // pred_region
          %230 = vsyncadd [#allocation9], 0
          %s231 = sshll.u32 %s5, 4
          %s232 = int_to_ptr.hbm [resolvable:$true] %s231
          %s233 = sshll.u32 [#allocation8], 4
          %s234 = int_to_ptr.vmem [resolvable:$true] %s233
          %239 = dma.hbm_to_vmem [thread:$0]  %s232, 1024, %s234, [#allocation9], 64, 64, 4
        $region32: #{tpu_custom_call.1} parent=11 // pred_fallthru
          _
      $region12: #{tpu_custom_call.1} parent=5 // pred_fallthru
        _
      %p240 = scmp.lt.s32.totalorder %s20, 2
      // Predicated region
      $region33: #{tpu_custom_call.1} parent=5 // pred_check
        %p241 = pneg %p240
      $region34: #{tpu_custom_call.1} parent=5 // pred_check_branch
        %243 = sbr.rel (%p241) target = $region36
      $region35: #{tpu_custom_call.1} parent=5 // pred_region
        // Predicated region
        $region37: #{tpu_custom_call.1} parent=35 // pred_check
          %p244 = pneg %p40
        $region38: #{tpu_custom_call.1} parent=35 // pred_check_branch
          %246 = sbr.rel (%p244) target = $region40
        $region39: #{tpu_custom_call.1} parent=35 // pred_region
          %s247 = sand.u32 %s30, 1
          %s248 = scalar_lea.sflag [#allocation3], %s247
          %s249 = sand.u32 %s30, 1
          %s250 = smul.addr %s249, 128
          %s251 = scalar_lea.vmem [#allocation2], %s250
          %s252 = smul.u32 32, %s20
          %254 = vsyncadd %s248, 0
          %s255 = smul.addr %s252, 4
          %s256 = scalar_lea.hbm %s0, %s255
          %s257 = sshll.u32 %s256, 4
          %s258 = int_to_ptr.hbm [resolvable:$true] %s257
          %s259 = sshll.u32 %s251, 4
          %s260 = int_to_ptr.vmem [resolvable:$true] %s259
          %265 = dma.hbm_to_vmem [thread:$0]  %s258, 2048, %s260, %s248, 64, 64, 4
        $region40: #{tpu_custom_call.1} parent=35 // pred_fallthru
          _
      $region36: #{tpu_custom_call.1} parent=5 // pred_fallthru
        _
      %p266 = scmp.le.s32.totalorder 1, %s20
      %p267 = scmp.lt.s32.totalorder %s20, 3
      %p268 = pnand %p266, %p267
      %p269 = pneg %p268
      // Predicated region
      $region41: #{tpu_custom_call.1} parent=5 // pred_check
        _
      $region42: #{tpu_custom_call.1} parent=5 // pred_check_branch
        %271 = sbr.rel (%p268) target = $region44
      $region43: #{tpu_custom_call.1} parent=5 // pred_region
        %s272 = ssub.s32 %s20, 1
        %s273 = sand.u32 %s33, 1
        %s274 = scalar_lea.sflag [#allocation3], %s273
        %s275 = sand.u32 %s33, 1
        %s276 = smul.addr %s275, 128
        %s277 = scalar_lea.vmem [#allocation2], %s276
        // Predicated region
        $region45: #{tpu_custom_call.1} parent=43 // pred_check
          %p278 = pneg %p46
        $region46: #{tpu_custom_call.1} parent=43 // pred_check_branch
          %280 = sbr.rel (%p278) target = $region48
        $region47: #{tpu_custom_call.1} parent=43 // pred_region
          %282 = dma.done %s274, 2048
        $region48: #{tpu_custom_call.1} parent=43 // pred_fallthru
          _
        // Predicated region
        $region49: #{tpu_custom_call.1} parent=43 // pred_check
          %p283 = pneg %p67
        $region50: #{tpu_custom_call.1} parent=43 // pred_check_branch
          %285 = sbr.rel (%p283) target = $region52
        $region51: #{tpu_custom_call.1} parent=43 // pred_region
          %287 = dma.done [#allocation6], 1024
        $region52: #{tpu_custom_call.1} parent=43 // pred_fallthru
          _
        // Predicated region
        $region53: #{tpu_custom_call.1} parent=43 // pred_check
          %p288 = pneg %p109
        $region54: #{tpu_custom_call.1} parent=43 // pred_check_branch
          %290 = sbr.rel (%p288) target = $region56
        $region55: #{tpu_custom_call.1} parent=43 // pred_region
          %292 = dma.done [#allocation6], 1024
        $region56: #{tpu_custom_call.1} parent=43 // pred_fallthru
          _
        // Predicated region
        $region57: #{tpu_custom_call.1} parent=43 // pred_check
          %p293 = pneg %p151
        $region58: #{tpu_custom_call.1} parent=43 // pred_check_branch
          %295 = sbr.rel (%p293) target = $region60
        $region59: #{tpu_custom_call.1} parent=43 // pred_region
          %297 = dma.done [#allocation9], 1024
        $region60: #{tpu_custom_call.1} parent=43 // pred_fallthru
          _
        %s298 = sand.u32 %s33, 1
        %s299 = scalar_lea.sflag [#allocation3], %s298
        %s300 = sand.u32 %s33, 1
        %s301 = smul.addr %s300, 128
        %s302 = scalar_lea.vmem [#allocation2], %s301
        %p303 = pneg %p46
        %p304 = pneg %p43
        %p305 = pneg %p67
        %p306 = pneg %p64
        %p307 = pneg %p88
        %p308 = pneg %p85
        %p309 = pneg %p109
        %p310 = pneg %p106
        %p311 = pneg %p130
        %p312 = pneg %p127
        %p313 = pneg %p151
        %p314 = pneg %p148
        %p315 = pneg %p177
        %p316 = pneg %p174
        %s317 = sand.u32 %s164, 1
        %s318 = scalar_lea.sflag [#allocation4], %s317
        %s319 = sand.u32 %s164, 1
        %s320 = smul.addr %s319, 256
        %s321 = scalar_lea.vmem [#allocation10], %s320
        %s322 = smul.u32 32, %s25
        %s323 = smul.u32 32, %s25
        %v324 = vld [vmem:[%s277] sm:$0xf]
        %v325 = vld [vmem:[%s277 + $0x4] sm:$0xf]
        %v326 = vld [vmem:[%s277 + $0x8] sm:$0xf]
        %v327 = vld [vmem:[%s277 + $0xc] sm:$0xf]
        %v328 = vld [vmem:[%s277 + $0x10] sm:$0xf]
        %v329 = vld [vmem:[%s277 + $0x14] sm:$0xf]
        %v330 = vld [vmem:[%s277 + $0x18] sm:$0xf]
        %v331 = vld [vmem:[%s277 + $0x1c] sm:$0xf]
        %v332 = vld [vmem:[%s277 + $0x20] sm:$0xf]
        %v333 = vld [vmem:[%s277 + $0x24] sm:$0xf]
        %v334 = vld [vmem:[%s277 + $0x28] sm:$0xf]
        %v335 = vld [vmem:[%s277 + $0x2c] sm:$0xf]
        %v336 = vld [vmem:[%s277 + $0x30] sm:$0xf]
        %v337 = vld [vmem:[%s277 + $0x34] sm:$0xf]
        %v338 = vld [vmem:[%s277 + $0x38] sm:$0xf]
        %v339 = vld [vmem:[%s277 + $0x3c] sm:$0xf]
        %v340 = vld [vmem:[%s277 + $0x40] sm:$0xf]
        %v341 = vld [vmem:[%s277 + $0x44] sm:$0xf]
        %v342 = vld [vmem:[%s277 + $0x48] sm:$0xf]
        %v343 = vld [vmem:[%s277 + $0x4c] sm:$0xf]
        %v344 = vld [vmem:[%s277 + $0x50] sm:$0xf]
        %v345 = vld [vmem:[%s277 + $0x54] sm:$0xf]
        %v346 = vld [vmem:[%s277 + $0x58] sm:$0xf]
        %v347 = vld [vmem:[%s277 + $0x5c] sm:$0xf]
        %v348 = vld [vmem:[%s277 + $0x60] sm:$0xf]
        %v349 = vld [vmem:[%s277 + $0x64] sm:$0xf]
        %v350 = vld [vmem:[%s277 + $0x68] sm:$0xf]
        %v351 = vld [vmem:[%s277 + $0x6c] sm:$0xf]
        %v352 = vld [vmem:[%s277 + $0x70] sm:$0xf]
        %v353 = vld [vmem:[%s277 + $0x74] sm:$0xf]
        %v354 = vld [vmem:[%s277 + $0x78] sm:$0xf]
        %v355 = vld [vmem:[%s277 + $0x7c] sm:$0xf]
        %v356 = vld [vmem:[#allocation5] sm:$0xf]
        %v357 = vld [vmem:[#allocation5 + $0x4] sm:$0xf]
        %v358 = vld [vmem:[#allocation5 + $0x8] sm:$0xf]
        %v359 = vld [vmem:[#allocation5 + $0xc] sm:$0xf]
        %v360 = vld [vmem:[#allocation5 + $0x10] sm:$0xf]
        %v361 = vld [vmem:[#allocation5 + $0x14] sm:$0xf]
        %v362 = vld [vmem:[#allocation5 + $0x18] sm:$0xf]
        %v363 = vld [vmem:[#allocation5 + $0x1c] sm:$0xf]
        %v364 = vld [vmem:[#allocation5 + $0x20] sm:$0xf]
        %v365 = vld [vmem:[#allocation5 + $0x24] sm:$0xf]
        %v366 = vld [vmem:[#allocation5 + $0x28] sm:$0xf]
        %v367 = vld [vmem:[#allocation5 + $0x2c] sm:$0xf]
        %v368 = vld [vmem:[#allocation5 + $0x30] sm:$0xf]
        %v369 = vld [vmem:[#allocation5 + $0x34] sm:$0xf]
        %v370 = vld [vmem:[#allocation5 + $0x38] sm:$0xf]
        %v371 = vld [vmem:[#allocation5 + $0x3c] sm:$0xf]
        %v372 = vld [vmem:[%s2] sm:$0x1]
        %v374 = vperm.slane %v372, 0
        %v408 = vunpack.c.l.b16 %v324
        %v409 = vunpack.c.l.b16 %v325
        %v410 = vunpack.c.l.b16 %v326
        %v411 = vunpack.c.l.b16 %v327
        %v412 = vunpack.c.l.b16 %v328
        %v413 = vunpack.c.l.b16 %v329
        %v414 = vunpack.c.l.b16 %v330
        %v415 = vunpack.c.l.b16 %v331
        %v416 = vunpack.c.l.b16 %v332
        %v417 = vunpack.c.l.b16 %v333
        %v418 = vunpack.c.l.b16 %v334
        %v419 = vunpack.c.l.b16 %v335
        %v420 = vunpack.c.l.b16 %v336
        %v421 = vunpack.c.l.b16 %v337
        %v422 = vunpack.c.l.b16 %v338
        %v423 = vunpack.c.l.b16 %v339
        %v424 = vunpack.c.l.b16 %v340
        %v425 = vunpack.c.l.b16 %v341
        %v426 = vunpack.c.l.b16 %v342
        %v427 = vunpack.c.l.b16 %v343
        %v428 = vunpack.c.l.b16 %v344
        %v429 = vunpack.c.l.b16 %v345
        %v430 = vunpack.c.l.b16 %v346
        %v431 = vunpack.c.l.b16 %v347
        %v432 = vunpack.c.l.b16 %v348
        %v433 = vunpack.c.l.b16 %v349
        %v434 = vunpack.c.l.b16 %v350
        %v435 = vunpack.c.l.b16 %v351
        %v436 = vunpack.c.l.b16 %v352
        %v437 = vunpack.c.l.b16 %v353
        %v438 = vunpack.c.l.b16 %v354
        %v439 = vunpack.c.l.b16 %v355
        %v440 = vpack.c.b16 %v409, %v408
        %v441 = vpack.c.b16 %v411, %v410
        %v442 = vpack.c.b16 %v413, %v412
        %v443 = vpack.c.b16 %v415, %v414
        %v444 = vpack.c.b16 %v417, %v416
        %v445 = vpack.c.b16 %v419, %v418
        %v446 = vpack.c.b16 %v421, %v420
        %v447 = vpack.c.b16 %v423, %v422
        %v448 = vpack.c.b16 %v425, %v424
        %v449 = vpack.c.b16 %v427, %v426
        %v450 = vpack.c.b16 %v429, %v428
        %v451 = vpack.c.b16 %v431, %v430
        %v452 = vpack.c.b16 %v433, %v432
        %v453 = vpack.c.b16 %v435, %v434
        %v454 = vpack.c.b16 %v437, %v436
        %v455 = vpack.c.b16 %v439, %v438
        %v488 = vunpack.c.l.b16 %v356
        %v489 = vunpack.c.l.b16 %v357
        %v490 = vunpack.c.l.b16 %v358
        %v491 = vunpack.c.l.b16 %v359
        %v492 = vunpack.c.l.b16 %v360
        %v493 = vunpack.c.l.b16 %v361
        %v494 = vunpack.c.l.b16 %v362
        %v495 = vunpack.c.l.b16 %v363
        %v496 = vunpack.c.l.b16 %v364
        %v497 = vunpack.c.l.b16 %v365
        %v498 = vunpack.c.l.b16 %v366
        %v499 = vunpack.c.l.b16 %v367
        %v500 = vunpack.c.l.b16 %v368
        %v501 = vunpack.c.l.b16 %v369
        %v502 = vunpack.c.l.b16 %v370
        %v503 = vunpack.c.l.b16 %v371
        %v504 = vpack.c.b16 %v489, %v488
        %v505 = vpack.c.b16 %v491, %v490
        %v506 = vpack.c.b16 %v493, %v492
        %v507 = vpack.c.b16 %v495, %v494
        %v508 = vpack.c.b16 %v497, %v496
        %v509 = vpack.c.b16 %v499, %v498
        %v510 = vpack.c.b16 %v501, %v500
        %v511 = vpack.c.b16 %v503, %v502
        %520 = vmatpush.bf16.msra.mxu0 %v511
        %521 = vmatpush.bf16.msra.mxu0 %v510
        %522 = vmatpush.bf16.msra.mxu0 %v509
        %523 = vmatpush.bf16.msra.mxu0 %v508
        %524 = vmatpush.bf16.msra.mxu0 %v507
        %525 = vmatpush.bf16.msra.mxu0 %v506
        %526 = vmatpush.bf16.msra.mxu0 %v505
        %527 = vmatpush.bf16.msra.mxu0 %v504
        %528 = vmatmul.bf16.gmra.mxu0 %v440
        %v529 = vpop.f32.mrf.mxu0
        %v530 = vadd.f32 %v374, %v529
        %v531 = vpop.f32.mrf.mxu0
        %v532 = vadd.f32 %v374, %v531
        %533 = vmatmul.bf16.gmra.mxu0 %v441
        %v534 = vpop.f32.mrf.mxu0
        %v535 = vadd.f32 %v374, %v534
        %v536 = vpop.f32.mrf.mxu0
        %v537 = vadd.f32 %v374, %v536
        %538 = vmatmul.bf16.gmra.mxu0 %v442
        %v539 = vpop.f32.mrf.mxu0
        %v540 = vadd.f32 %v374, %v539
        %v541 = vpop.f32.mrf.mxu0
        %v542 = vadd.f32 %v374, %v541
        %543 = vmatmul.bf16.gmra.mxu0 %v443
        %v544 = vpop.f32.mrf.mxu0
        %v545 = vadd.f32 %v374, %v544
        %v546 = vpop.f32.mrf.mxu0
        %v547 = vadd.f32 %v374, %v546
        %548 = vmatmul.bf16.gmra.mxu0 %v444
        %v549 = vpop.f32.mrf.mxu0
        %v550 = vadd.f32 %v374, %v549
        %v551 = vpop.f32.mrf.mxu0
        %v552 = vadd.f32 %v374, %v551
        %553 = vmatmul.bf16.gmra.mxu0 %v445
        %v554 = vpop.f32.mrf.mxu0
        %v555 = vadd.f32 %v374, %v554
        %v556 = vpop.f32.mrf.mxu0
        %v557 = vadd.f32 %v374, %v556
        %558 = vmatmul.bf16.gmra.mxu0 %v446
        %v559 = vpop.f32.mrf.mxu0
        %v560 = vadd.f32 %v374, %v559
        %v561 = vpop.f32.mrf.mxu0
        %v562 = vadd.f32 %v374, %v561
        %563 = vmatmul.bf16.gmra.mxu0 %v447
        %v564 = vpop.f32.mrf.mxu0
        %v565 = vadd.f32 %v374, %v564
        %v566 = vpop.f32.mrf.mxu0
        %v567 = vadd.f32 %v374, %v566
        %568 = vmatmul.bf16.gmra.mxu0 %v448
        %v569 = vpop.f32.mrf.mxu0
        %v570 = vadd.f32 %v374, %v569
        %v571 = vpop.f32.mrf.mxu0
        %v572 = vadd.f32 %v374, %v571
        %573 = vmatmul.bf16.gmra.mxu0 %v449
        %v574 = vpop.f32.mrf.mxu0
        %v575 = vadd.f32 %v374, %v574
        %v576 = vpop.f32.mrf.mxu0
        %v577 = vadd.f32 %v374, %v576
        %578 = vmatmul.bf16.gmra.mxu0 %v450
        %v579 = vpop.f32.mrf.mxu0
        %v580 = vadd.f32 %v374, %v579
        %v581 = vpop.f32.mrf.mxu0
        %v582 = vadd.f32 %v374, %v581
        %583 = vmatmul.bf16.gmra.mxu0 %v451
        %v584 = vpop.f32.mrf.mxu0
        %v585 = vadd.f32 %v374, %v584
        %v586 = vpop.f32.mrf.mxu0
        %v587 = vadd.f32 %v374, %v586
        %588 = vmatmul.bf16.gmra.mxu0 %v452
        %v589 = vpop.f32.mrf.mxu0
        %v590 = vadd.f32 %v374, %v589
        %v591 = vpop.f32.mrf.mxu0
        %v592 = vadd.f32 %v374, %v591
        %593 = vmatmul.bf16.gmra.mxu0 %v453
        %v594 = vpop.f32.mrf.mxu0
        %v595 = vadd.f32 %v374, %v594
        %v596 = vpop.f32.mrf.mxu0
        %v597 = vadd.f32 %v374, %v596
        %598 = vmatmul.bf16.gmra.mxu0 %v454
        %v599 = vpop.f32.mrf.mxu0
        %v600 = vadd.f32 %v374, %v599
        %v601 = vpop.f32.mrf.mxu0
        %v602 = vadd.f32 %v374, %v601
        %603 = vmatmul.bf16.gmra.mxu0 %v455
        %v604 = vpop.f32.mrf.mxu0
        %v605 = vadd.f32 %v374, %v604
        %v606 = vpop.f32.mrf.mxu0
        %v607 = vadd.f32 %v374, %v606
        %608 = vdwg.mxu0
        %v609 = vmax.f32 %v530, 0.0
        %v610 = vmax.f32 %v532, 0.0
        %v611 = vmax.f32 %v535, 0.0
        %v612 = vmax.f32 %v537, 0.0
        %v613 = vmax.f32 %v540, 0.0
        %v614 = vmax.f32 %v542, 0.0
        %v615 = vmax.f32 %v545, 0.0
        %v616 = vmax.f32 %v547, 0.0
        %v617 = vmax.f32 %v550, 0.0
        %v618 = vmax.f32 %v552, 0.0
        %v619 = vmax.f32 %v555, 0.0
        %v620 = vmax.f32 %v557, 0.0
        %v621 = vmax.f32 %v560, 0.0
        %v622 = vmax.f32 %v562, 0.0
        %v623 = vmax.f32 %v565, 0.0
        %v624 = vmax.f32 %v567, 0.0
        %v625 = vmax.f32 %v570, 0.0
        %v626 = vmax.f32 %v572, 0.0
        %v627 = vmax.f32 %v575, 0.0
        %v628 = vmax.f32 %v577, 0.0
        %v629 = vmax.f32 %v580, 0.0
        %v630 = vmax.f32 %v582, 0.0
        %v631 = vmax.f32 %v585, 0.0
        %v632 = vmax.f32 %v587, 0.0
        %v633 = vmax.f32 %v590, 0.0
        %v634 = vmax.f32 %v592, 0.0
        %v635 = vmax.f32 %v595, 0.0
        %v636 = vmax.f32 %v597, 0.0
        %v637 = vmax.f32 %v600, 0.0
        %v638 = vmax.f32 %v602, 0.0
        %v639 = vmax.f32 %v605, 0.0
        %v640 = vmax.f32 %v607, 0.0
        %v641 = vpack.c.bf16 %v610, %v609
        %v642 = vpack.c.bf16 %v612, %v611
        %v643 = vpack.c.bf16 %v614, %v613
        %v644 = vpack.c.bf16 %v616, %v615
        %v645 = vpack.c.bf16 %v618, %v617
        %v646 = vpack.c.bf16 %v620, %v619
        %v647 = vpack.c.bf16 %v622, %v621
        %v648 = vpack.c.bf16 %v624, %v623
        %v649 = vpack.c.bf16 %v626, %v625
        %v650 = vpack.c.bf16 %v628, %v627
        %v651 = vpack.c.bf16 %v630, %v629
        %v652 = vpack.c.bf16 %v632, %v631
        %v653 = vpack.c.bf16 %v634, %v633
        %v654 = vpack.c.bf16 %v636, %v635
        %v655 = vpack.c.bf16 %v638, %v637
        %v656 = vpack.c.bf16 %v640, %v639
        %v657 = vld [vmem:[#allocation7] sm:$0xf]
        %v658 = vld [vmem:[#allocation7 + $0x4] sm:$0xf]
        %v659 = vld [vmem:[#allocation7 + $0x8] sm:$0xf]
        %v660 = vld [vmem:[#allocation7 + $0xc] sm:$0xf]
        %v661 = vld [vmem:[#allocation7 + $0x10] sm:$0xf]
        %v662 = vld [vmem:[#allocation7 + $0x14] sm:$0xf]
        %v663 = vld [vmem:[#allocation7 + $0x18] sm:$0xf]
        %v664 = vld [vmem:[#allocation7 + $0x1c] sm:$0xf]
        %v665 = vld [vmem:[#allocation7 + $0x20] sm:$0xf]
        %v666 = vld [vmem:[#allocation7 + $0x24] sm:$0xf]
        %v667 = vld [vmem:[#allocation7 + $0x28] sm:$0xf]
        %v668 = vld [vmem:[#allocation7 + $0x2c] sm:$0xf]
        %v669 = vld [vmem:[#allocation7 + $0x30] sm:$0xf]
        %v670 = vld [vmem:[#allocation7 + $0x34] sm:$0xf]
        %v671 = vld [vmem:[#allocation7 + $0x38] sm:$0xf]
        %v672 = vld [vmem:[#allocation7 + $0x3c] sm:$0xf]
        %v673 = vld [vmem:[%s4] sm:$0x1]
        %v675 = vperm.slane %v673, 0
        %v693 = vunpack.c.l.b16 %v657
        %v694 = vunpack.c.l.b16 %v658
        %v695 = vunpack.c.l.b16 %v659
        %v696 = vunpack.c.l.b16 %v660
        %v697 = vunpack.c.l.b16 %v661
        %v698 = vunpack.c.l.b16 %v662
        %v699 = vunpack.c.l.b16 %v663
        %v700 = vunpack.c.l.b16 %v664
        %v701 = vunpack.c.l.b16 %v665
        %v702 = vunpack.c.l.b16 %v666
        %v703 = vunpack.c.l.b16 %v667
        %v704 = vunpack.c.l.b16 %v668
        %v705 = vunpack.c.l.b16 %v669
        %v706 = vunpack.c.l.b16 %v670
        %v707 = vunpack.c.l.b16 %v671
        %v708 = vunpack.c.l.b16 %v672
        %v709 = vpack.c.b16 %v694, %v693
        %v710 = vpack.c.b16 %v696, %v695
        %v711 = vpack.c.b16 %v698, %v697
        %v712 = vpack.c.b16 %v700, %v699
        %v713 = vpack.c.b16 %v702, %v701
        %v714 = vpack.c.b16 %v704, %v703
        %v715 = vpack.c.b16 %v706, %v705
        %v716 = vpack.c.b16 %v708, %v707
        %725 = vmatpush.bf16.msra.mxu0 %v716
        %726 = vmatpush.bf16.msra.mxu0 %v715
        %727 = vmatpush.bf16.msra.mxu0 %v714
        %728 = vmatpush.bf16.msra.mxu0 %v713
        %729 = vmatpush.bf16.msra.mxu0 %v712
        %730 = vmatpush.bf16.msra.mxu0 %v711
        %731 = vmatpush.bf16.msra.mxu0 %v710
        %732 = vmatpush.bf16.msra.mxu0 %v709
        %733 = vmatmul.bf16.gmra.mxu0 %v641
        %v734 = vpop.f32.mrf.mxu0
        %v735 = vadd.f32 %v675, %v734
        %v736 = vpop.f32.mrf.mxu0
        %v737 = vadd.f32 %v675, %v736
        %738 = vmatmul.bf16.gmra.mxu0 %v642
        %v739 = vpop.f32.mrf.mxu0
        %v740 = vadd.f32 %v675, %v739
        %v741 = vpop.f32.mrf.mxu0
        %v742 = vadd.f32 %v675, %v741
        %743 = vmatmul.bf16.gmra.mxu0 %v643
        %v744 = vpop.f32.mrf.mxu0
        %v745 = vadd.f32 %v675, %v744
        %v746 = vpop.f32.mrf.mxu0
        %v747 = vadd.f32 %v675, %v746
        %748 = vmatmul.bf16.gmra.mxu0 %v644
        %v749 = vpop.f32.mrf.mxu0
        %v750 = vadd.f32 %v675, %v749
        %v751 = vpop.f32.mrf.mxu0
        %v752 = vadd.f32 %v675, %v751
        %753 = vmatmul.bf16.gmra.mxu0 %v645
        %v754 = vpop.f32.mrf.mxu0
        %v755 = vadd.f32 %v675, %v754
        %v756 = vpop.f32.mrf.mxu0
        %v757 = vadd.f32 %v675, %v756
        %758 = vmatmul.bf16.gmra.mxu0 %v646
        %v759 = vpop.f32.mrf.mxu0
        %v760 = vadd.f32 %v675, %v759
        %v761 = vpop.f32.mrf.mxu0
        %v762 = vadd.f32 %v675, %v761
        %763 = vmatmul.bf16.gmra.mxu0 %v647
        %v764 = vpop.f32.mrf.mxu0
        %v765 = vadd.f32 %v675, %v764
        %v766 = vpop.f32.mrf.mxu0
        %v767 = vadd.f32 %v675, %v766
        %768 = vmatmul.bf16.gmra.mxu0 %v648
        %v769 = vpop.f32.mrf.mxu0
        %v770 = vadd.f32 %v675, %v769
        %v771 = vpop.f32.mrf.mxu0
        %v772 = vadd.f32 %v675, %v771
        %773 = vmatmul.bf16.gmra.mxu0 %v649
        %v774 = vpop.f32.mrf.mxu0
        %v775 = vadd.f32 %v675, %v774
        %v776 = vpop.f32.mrf.mxu0
        %v777 = vadd.f32 %v675, %v776
        %778 = vmatmul.bf16.gmra.mxu0 %v650
        %v779 = vpop.f32.mrf.mxu0
        %v780 = vadd.f32 %v675, %v779
        %v781 = vpop.f32.mrf.mxu0
        %v782 = vadd.f32 %v675, %v781
        %783 = vmatmul.bf16.gmra.mxu0 %v651
        %v784 = vpop.f32.mrf.mxu0
        %v785 = vadd.f32 %v675, %v784
        %v786 = vpop.f32.mrf.mxu0
        %v787 = vadd.f32 %v675, %v786
        %788 = vmatmul.bf16.gmra.mxu0 %v652
        %v789 = vpop.f32.mrf.mxu0
        %v790 = vadd.f32 %v675, %v789
        %v791 = vpop.f32.mrf.mxu0
        %v792 = vadd.f32 %v675, %v791
        %793 = vmatmul.bf16.gmra.mxu0 %v653
        %v794 = vpop.f32.mrf.mxu0
        %v795 = vadd.f32 %v675, %v794
        %v796 = vpop.f32.mrf.mxu0
        %v797 = vadd.f32 %v675, %v796
        %798 = vmatmul.bf16.gmra.mxu0 %v654
        %v799 = vpop.f32.mrf.mxu0
        %v800 = vadd.f32 %v675, %v799
        %v801 = vpop.f32.mrf.mxu0
        %v802 = vadd.f32 %v675, %v801
        %803 = vmatmul.bf16.gmra.mxu0 %v655
        %v804 = vpop.f32.mrf.mxu0
        %v805 = vadd.f32 %v675, %v804
        %v806 = vpop.f32.mrf.mxu0
        %v807 = vadd.f32 %v675, %v806
        %808 = vmatmul.bf16.gmra.mxu0 %v656
        %v809 = vpop.f32.mrf.mxu0
        %v810 = vadd.f32 %v675, %v809
        %v811 = vpop.f32.mrf.mxu0
        %v812 = vadd.f32 %v675, %v811
        %813 = vdwg.mxu0
        %v814 = vmul.f32 %v735, %v735
        %v815 = vmul.f32 %v737, %v737
        %v816 = vmul.f32 %v740, %v740
        %v817 = vmul.f32 %v742, %v742
        %v818 = vmul.f32 %v745, %v745
        %v819 = vmul.f32 %v747, %v747
        %v820 = vmul.f32 %v750, %v750
        %v821 = vmul.f32 %v752, %v752
        %v822 = vmul.f32 %v755, %v755
        %v823 = vmul.f32 %v757, %v757
        %v824 = vmul.f32 %v760, %v760
        %v825 = vmul.f32 %v762, %v762
        %v826 = vmul.f32 %v765, %v765
        %v827 = vmul.f32 %v767, %v767
        %v828 = vmul.f32 %v770, %v770
        %v829 = vmul.f32 %v772, %v772
        %v830 = vmul.f32 %v775, %v775
        %v831 = vmul.f32 %v777, %v777
        %v832 = vmul.f32 %v780, %v780
        %v833 = vmul.f32 %v782, %v782
        %v834 = vmul.f32 %v785, %v785
        %v835 = vmul.f32 %v787, %v787
        %v836 = vmul.f32 %v790, %v790
        %v837 = vmul.f32 %v792, %v792
        %v838 = vmul.f32 %v795, %v795
        %v839 = vmul.f32 %v797, %v797
        %v840 = vmul.f32 %v800, %v800
        %v841 = vmul.f32 %v802, %v802
        %v842 = vmul.f32 %v805, %v805
        %v843 = vmul.f32 %v807, %v807
        %v844 = vmul.f32 %v810, %v810
        %v845 = vmul.f32 %v812, %v812
        %846 = vadd.xlane.f32.xlu0 %v814
        %v847 = vpop.xlane.xlu0 %846
        %848 = vadd.xlane.f32.xlu0 %v815
        %v849 = vpop.xlane.xlu0 %848
        %850 = vadd.xlane.f32.xlu0 %v816
        %v851 = vpop.xlane.xlu0 %850
        %852 = vadd.xlane.f32.xlu0 %v817
        %v853 = vpop.xlane.xlu0 %852
        %854 = vadd.xlane.f32.xlu0 %v818
        %v855 = vpop.xlane.xlu0 %854
        %856 = vadd.xlane.f32.xlu0 %v819
        %v857 = vpop.xlane.xlu0 %856
        %858 = vadd.xlane.f32.xlu0 %v820
        %v859 = vpop.xlane.xlu0 %858
        %860 = vadd.xlane.f32.xlu0 %v821
        %v861 = vpop.xlane.xlu0 %860
        %862 = vadd.xlane.f32.xlu0 %v822
        %v863 = vpop.xlane.xlu0 %862
        %864 = vadd.xlane.f32.xlu0 %v823
        %v865 = vpop.xlane.xlu0 %864
        %866 = vadd.xlane.f32.xlu0 %v824
        %v867 = vpop.xlane.xlu0 %866
        %868 = vadd.xlane.f32.xlu0 %v825
        %v869 = vpop.xlane.xlu0 %868
        %870 = vadd.xlane.f32.xlu0 %v826
        %v871 = vpop.xlane.xlu0 %870
        %872 = vadd.xlane.f32.xlu0 %v827
        %v873 = vpop.xlane.xlu0 %872
        %874 = vadd.xlane.f32.xlu0 %v828
        %v875 = vpop.xlane.xlu0 %874
        %876 = vadd.xlane.f32.xlu0 %v829
        %v877 = vpop.xlane.xlu0 %876
        %878 = vadd.xlane.f32.xlu0 %v830
        %v879 = vpop.xlane.xlu0 %878
        %880 = vadd.xlane.f32.xlu0 %v831
        %v881 = vpop.xlane.xlu0 %880
        %882 = vadd.xlane.f32.xlu0 %v832
        %v883 = vpop.xlane.xlu0 %882
        %884 = vadd.xlane.f32.xlu0 %v833
        %v885 = vpop.xlane.xlu0 %884
        %886 = vadd.xlane.f32.xlu0 %v834
        %v887 = vpop.xlane.xlu0 %886
        %888 = vadd.xlane.f32.xlu0 %v835
        %v889 = vpop.xlane.xlu0 %888
        %890 = vadd.xlane.f32.xlu0 %v836
        %v891 = vpop.xlane.xlu0 %890
        %892 = vadd.xlane.f32.xlu0 %v837
        %v893 = vpop.xlane.xlu0 %892
        %894 = vadd.xlane.f32.xlu0 %v838
        %v895 = vpop.xlane.xlu0 %894
        %896 = vadd.xlane.f32.xlu0 %v839
        %v897 = vpop.xlane.xlu0 %896
        %898 = vadd.xlane.f32.xlu0 %v840
        %v899 = vpop.xlane.xlu0 %898
        %900 = vadd.xlane.f32.xlu0 %v841
        %v901 = vpop.xlane.xlu0 %900
        %902 = vadd.xlane.f32.xlu0 %v842
        %v903 = vpop.xlane.xlu0 %902
        %904 = vadd.xlane.f32.xlu0 %v843
        %v905 = vpop.xlane.xlu0 %904
        %906 = vadd.xlane.f32.xlu0 %v844
        %v907 = vpop.xlane.xlu0 %906
        %908 = vadd.xlane.f32.xlu0 %v845
        %v909 = vpop.xlane.xlu0 %908
        %v910 = vmax.f32 %v847, 1e-24
        %v911 = vmax.f32 %v849, 1e-24
        %v912 = vmax.f32 %v851, 1e-24
        %v913 = vmax.f32 %v853, 1e-24
        %v914 = vmax.f32 %v855, 1e-24
        %v915 = vmax.f32 %v857, 1e-24
        %v916 = vmax.f32 %v859, 1e-24
        %v917 = vmax.f32 %v861, 1e-24
        %v918 = vmax.f32 %v863, 1e-24
        %v919 = vmax.f32 %v865, 1e-24
        %v920 = vmax.f32 %v867, 1e-24
        %v921 = vmax.f32 %v869, 1e-24
        %v922 = vmax.f32 %v871, 1e-24
        %v923 = vmax.f32 %v873, 1e-24
        %v924 = vmax.f32 %v875, 1e-24
        %v925 = vmax.f32 %v877, 1e-24
        %v926 = vmax.f32 %v879, 1e-24
        %v927 = vmax.f32 %v881, 1e-24
        %v928 = vmax.f32 %v883, 1e-24
        %v929 = vmax.f32 %v885, 1e-24
        %v930 = vmax.f32 %v887, 1e-24
        %v931 = vmax.f32 %v889, 1e-24
        %v932 = vmax.f32 %v891, 1e-24
        %v933 = vmax.f32 %v893, 1e-24
        %v934 = vmax.f32 %v895, 1e-24
        %v935 = vmax.f32 %v897, 1e-24
        %v936 = vmax.f32 %v899, 1e-24
        %v937 = vmax.f32 %v901, 1e-24
        %v938 = vmax.f32 %v903, 1e-24
        %v939 = vmax.f32 %v905, 1e-24
        %v940 = vmax.f32 %v907, 1e-24
        %v941 = vmax.f32 %v909, 1e-24
        %v942 = vrsqrt.pop %v910
        %v943 = vmul.f32 %v942, %v910
        %v944 = vmul.f32 %v943, %v942
        %v945 = vmul.f32 0.5, %v944
        %v946 = vsub.f32 1.5, %v945
        %v947 = vmul.f32 %v942, %v946
        %vm948 = vweird.f32 %v910
        %vm949 = vweird.f32 %v942
        %vm950 = vmor %vm948, %vm949
        %v951 = vsel %vm950, %v942, %v947
        %v952 = vrsqrt.pop %v911
        %v953 = vmul.f32 %v952, %v911
        %v954 = vmul.f32 %v953, %v952
        %v955 = vmul.f32 0.5, %v954
        %v956 = vsub.f32 1.5, %v955
        %v957 = vmul.f32 %v952, %v956
        %vm958 = vweird.f32 %v911
        %vm959 = vweird.f32 %v952
        %vm960 = vmor %vm958, %vm959
        %v961 = vsel %vm960, %v952, %v957
        %v962 = vrsqrt.pop %v912
        %v963 = vmul.f32 %v962, %v912
        %v964 = vmul.f32 %v963, %v962
        %v965 = vmul.f32 0.5, %v964
        %v966 = vsub.f32 1.5, %v965
        %v967 = vmul.f32 %v962, %v966
        %vm968 = vweird.f32 %v912
        %vm969 = vweird.f32 %v962
        %vm970 = vmor %vm968, %vm969
        %v971 = vsel %vm970, %v962, %v967
        %v972 = vrsqrt.pop %v913
        %v973 = vmul.f32 %v972, %v913
        %v974 = vmul.f32 %v973, %v972
        %v975 = vmul.f32 0.5, %v974
        %v976 = vsub.f32 1.5, %v975
        %v977 = vmul.f32 %v972, %v976
        %vm978 = vweird.f32 %v913
        %vm979 = vweird.f32 %v972
        %vm980 = vmor %vm978, %vm979
        %v981 = vsel %vm980, %v972, %v977
        %v982 = vrsqrt.pop %v914
        %v983 = vmul.f32 %v982, %v914
        %v984 = vmul.f32 %v983, %v982
        %v985 = vmul.f32 0.5, %v984
        %v986 = vsub.f32 1.5, %v985
        %v987 = vmul.f32 %v982, %v986
        %vm988 = vweird.f32 %v914
        %vm989 = vweird.f32 %v982
        %vm990 = vmor %vm988, %vm989
        %v991 = vsel %vm990, %v982, %v987
        %v992 = vrsqrt.pop %v915
        %v993 = vmul.f32 %v992, %v915
        %v994 = vmul.f32 %v993, %v992
        %v995 = vmul.f32 0.5, %v994
        %v996 = vsub.f32 1.5, %v995
        %v997 = vmul.f32 %v992, %v996
        %vm998 = vweird.f32 %v915
        %vm999 = vweird.f32 %v992
        %vm1000 = vmor %vm998, %vm999
        %v1001 = vsel %vm1000, %v992, %v997
        %v1002 = vrsqrt.pop %v916
        %v1003 = vmul.f32 %v1002, %v916
        %v1004 = vmul.f32 %v1003, %v1002
        %v1005 = vmul.f32 0.5, %v1004
        %v1006 = vsub.f32 1.5, %v1005
        %v1007 = vmul.f32 %v1002, %v1006
        %vm1008 = vweird.f32 %v916
        %vm1009 = vweird.f32 %v1002
        %vm1010 = vmor %vm1008, %vm1009
        %v1011 = vsel %vm1010, %v1002, %v1007
        %v1012 = vrsqrt.pop %v917
        %v1013 = vmul.f32 %v1012, %v917
        %v1014 = vmul.f32 %v1013, %v1012
        %v1015 = vmul.f32 0.5, %v1014
        %v1016 = vsub.f32 1.5, %v1015
        %v1017 = vmul.f32 %v1012, %v1016
        %vm1018 = vweird.f32 %v917
        %vm1019 = vweird.f32 %v1012
        %vm1020 = vmor %vm1018, %vm1019
        %v1021 = vsel %vm1020, %v1012, %v1017
        %v1022 = vrsqrt.pop %v918
        %v1023 = vmul.f32 %v1022, %v918
        %v1024 = vmul.f32 %v1023, %v1022
        %v1025 = vmul.f32 0.5, %v1024
        %v1026 = vsub.f32 1.5, %v1025
        %v1027 = vmul.f32 %v1022, %v1026
        %vm1028 = vweird.f32 %v918
        %vm1029 = vweird.f32 %v1022
        %vm1030 = vmor %vm1028, %vm1029
        %v1031 = vsel %vm1030, %v1022, %v1027
        %v1032 = vrsqrt.pop %v919
        %v1033 = vmul.f32 %v1032, %v919
        %v1034 = vmul.f32 %v1033, %v1032
        %v1035 = vmul.f32 0.5, %v1034
        %v1036 = vsub.f32 1.5, %v1035
        %v1037 = vmul.f32 %v1032, %v1036
        %vm1038 = vweird.f32 %v919
        %vm1039 = vweird.f32 %v1032
        %vm1040 = vmor %vm1038, %vm1039
        %v1041 = vsel %vm1040, %v1032, %v1037
        %v1042 = vrsqrt.pop %v920
        %v1043 = vmul.f32 %v1042, %v920
        %v1044 = vmul.f32 %v1043, %v1042
        %v1045 = vmul.f32 0.5, %v1044
        %v1046 = vsub.f32 1.5, %v1045
        %v1047 = vmul.f32 %v1042, %v1046
        %vm1048 = vweird.f32 %v920
        %vm1049 = vweird.f32 %v1042
        %vm1050 = vmor %vm1048, %vm1049
        %v1051 = vsel %vm1050, %v1042, %v1047
        %v1052 = vrsqrt.pop %v921
        %v1053 = vmul.f32 %v1052, %v921
        %v1054 = vmul.f32 %v1053, %v1052
        %v1055 = vmul.f32 0.5, %v1054
        %v1056 = vsub.f32 1.5, %v1055
        %v1057 = vmul.f32 %v1052, %v1056
        %vm1058 = vweird.f32 %v921
        %vm1059 = vweird.f32 %v1052
        %vm1060 = vmor %vm1058, %vm1059
        %v1061 = vsel %vm1060, %v1052, %v1057
        %v1062 = vrsqrt.pop %v922
        %v1063 = vmul.f32 %v1062, %v922
        %v1064 = vmul.f32 %v1063, %v1062
        %v1065 = vmul.f32 0.5, %v1064
        %v1066 = vsub.f32 1.5, %v1065
        %v1067 = vmul.f32 %v1062, %v1066
        %vm1068 = vweird.f32 %v922
        %vm1069 = vweird.f32 %v1062
        %vm1070 = vmor %vm1068, %vm1069
        %v1071 = vsel %vm1070, %v1062, %v1067
        %v1072 = vrsqrt.pop %v923
        %v1073 = vmul.f32 %v1072, %v923
        %v1074 = vmul.f32 %v1073, %v1072
        %v1075 = vmul.f32 0.5, %v1074
        %v1076 = vsub.f32 1.5, %v1075
        %v1077 = vmul.f32 %v1072, %v1076
        %vm1078 = vweird.f32 %v923
        %vm1079 = vweird.f32 %v1072
        %vm1080 = vmor %vm1078, %vm1079
        %v1081 = vsel %vm1080, %v1072, %v1077
        %v1082 = vrsqrt.pop %v924
        %v1083 = vmul.f32 %v1082, %v924
        %v1084 = vmul.f32 %v1083, %v1082
        %v1085 = vmul.f32 0.5, %v1084
        %v1086 = vsub.f32 1.5, %v1085
        %v1087 = vmul.f32 %v1082, %v1086
        %vm1088 = vweird.f32 %v924
        %vm1089 = vweird.f32 %v1082
        %vm1090 = vmor %vm1088, %vm1089
        %v1091 = vsel %vm1090, %v1082, %v1087
        %v1092 = vrsqrt.pop %v925
        %v1093 = vmul.f32 %v1092, %v925
        %v1094 = vmul.f32 %v1093, %v1092
        %v1095 = vmul.f32 0.5, %v1094
        %v1096 = vsub.f32 1.5, %v1095
        %v1097 = vmul.f32 %v1092, %v1096
        %vm1098 = vweird.f32 %v925
        %vm1099 = vweird.f32 %v1092
        %vm1100 = vmor %vm1098, %vm1099
        %v1101 = vsel %vm1100, %v1092, %v1097
        %v1102 = vrsqrt.pop %v926
        %v1103 = vmul.f32 %v1102, %v926
        %v1104 = vmul.f32 %v1103, %v1102
        %v1105 = vmul.f32 0.5, %v1104
        %v1106 = vsub.f32 1.5, %v1105
        %v1107 = vmul.f32 %v1102, %v1106
        %vm1108 = vweird.f32 %v926
        %vm1109 = vweird.f32 %v1102
        %vm1110 = vmor %vm1108, %vm1109
        %v1111 = vsel %vm1110, %v1102, %v1107
        %v1112 = vrsqrt.pop %v927
        %v1113 = vmul.f32 %v1112, %v927
        %v1114 = vmul.f32 %v1113, %v1112
        %v1115 = vmul.f32 0.5, %v1114
        %v1116 = vsub.f32 1.5, %v1115
        %v1117 = vmul.f32 %v1112, %v1116
        %vm1118 = vweird.f32 %v927
        %vm1119 = vweird.f32 %v1112
        %vm1120 = vmor %vm1118, %vm1119
        %v1121 = vsel %vm1120, %v1112, %v1117
        %v1122 = vrsqrt.pop %v928
        %v1123 = vmul.f32 %v1122, %v928
        %v1124 = vmul.f32 %v1123, %v1122
        %v1125 = vmul.f32 0.5, %v1124
        %v1126 = vsub.f32 1.5, %v1125
        %v1127 = vmul.f32 %v1122, %v1126
        %vm1128 = vweird.f32 %v928
        %vm1129 = vweird.f32 %v1122
        %vm1130 = vmor %vm1128, %vm1129
        %v1131 = vsel %vm1130, %v1122, %v1127
        %v1132 = vrsqrt.pop %v929
        %v1133 = vmul.f32 %v1132, %v929
        %v1134 = vmul.f32 %v1133, %v1132
        %v1135 = vmul.f32 0.5, %v1134
        %v1136 = vsub.f32 1.5, %v1135
        %v1137 = vmul.f32 %v1132, %v1136
        %vm1138 = vweird.f32 %v929
        %vm1139 = vweird.f32 %v1132
        %vm1140 = vmor %vm1138, %vm1139
        %v1141 = vsel %vm1140, %v1132, %v1137
        %v1142 = vrsqrt.pop %v930
        %v1143 = vmul.f32 %v1142, %v930
        %v1144 = vmul.f32 %v1143, %v1142
        %v1145 = vmul.f32 0.5, %v1144
        %v1146 = vsub.f32 1.5, %v1145
        %v1147 = vmul.f32 %v1142, %v1146
        %vm1148 = vweird.f32 %v930
        %vm1149 = vweird.f32 %v1142
        %vm1150 = vmor %vm1148, %vm1149
        %v1151 = vsel %vm1150, %v1142, %v1147
        %v1152 = vrsqrt.pop %v931
        %v1153 = vmul.f32 %v1152, %v931
        %v1154 = vmul.f32 %v1153, %v1152
        %v1155 = vmul.f32 0.5, %v1154
        %v1156 = vsub.f32 1.5, %v1155
        %v1157 = vmul.f32 %v1152, %v1156
        %vm1158 = vweird.f32 %v931
        %vm1159 = vweird.f32 %v1152
        %vm1160 = vmor %vm1158, %vm1159
        %v1161 = vsel %vm1160, %v1152, %v1157
        %v1162 = vrsqrt.pop %v932
        %v1163 = vmul.f32 %v1162, %v932
        %v1164 = vmul.f32 %v1163, %v1162
        %v1165 = vmul.f32 0.5, %v1164
        %v1166 = vsub.f32 1.5, %v1165
        %v1167 = vmul.f32 %v1162, %v1166
        %vm1168 = vweird.f32 %v932
        %vm1169 = vweird.f32 %v1162
        %vm1170 = vmor %vm1168, %vm1169
        %v1171 = vsel %vm1170, %v1162, %v1167
        %v1172 = vrsqrt.pop %v933
        %v1173 = vmul.f32 %v1172, %v933
        %v1174 = vmul.f32 %v1173, %v1172
        %v1175 = vmul.f32 0.5, %v1174
        %v1176 = vsub.f32 1.5, %v1175
        %v1177 = vmul.f32 %v1172, %v1176
        %vm1178 = vweird.f32 %v933
        %vm1179 = vweird.f32 %v1172
        %vm1180 = vmor %vm1178, %vm1179
        %v1181 = vsel %vm1180, %v1172, %v1177
        %v1182 = vrsqrt.pop %v934
        %v1183 = vmul.f32 %v1182, %v934
        %v1184 = vmul.f32 %v1183, %v1182
        %v1185 = vmul.f32 0.5, %v1184
        %v1186 = vsub.f32 1.5, %v1185
        %v1187 = vmul.f32 %v1182, %v1186
        %vm1188 = vweird.f32 %v934
        %vm1189 = vweird.f32 %v1182
        %vm1190 = vmor %vm1188, %vm1189
        %v1191 = vsel %vm1190, %v1182, %v1187
        %v1192 = vrsqrt.pop %v935
        %v1193 = vmul.f32 %v1192, %v935
        %v1194 = vmul.f32 %v1193, %v1192
        %v1195 = vmul.f32 0.5, %v1194
        %v1196 = vsub.f32 1.5, %v1195
        %v1197 = vmul.f32 %v1192, %v1196
        %vm1198 = vweird.f32 %v935
        %vm1199 = vweird.f32 %v1192
        %vm1200 = vmor %vm1198, %vm1199
        %v1201 = vsel %vm1200, %v1192, %v1197
        %v1202 = vrsqrt.pop %v936
        %v1203 = vmul.f32 %v1202, %v936
        %v1204 = vmul.f32 %v1203, %v1202
        %v1205 = vmul.f32 0.5, %v1204
        %v1206 = vsub.f32 1.5, %v1205
        %v1207 = vmul.f32 %v1202, %v1206
        %vm1208 = vweird.f32 %v936
        %vm1209 = vweird.f32 %v1202
        %vm1210 = vmor %vm1208, %vm1209
        %v1211 = vsel %vm1210, %v1202, %v1207
        %v1212 = vrsqrt.pop %v937
        %v1213 = vmul.f32 %v1212, %v937
        %v1214 = vmul.f32 %v1213, %v1212
        %v1215 = vmul.f32 0.5, %v1214
        %v1216 = vsub.f32 1.5, %v1215
        %v1217 = vmul.f32 %v1212, %v1216
        %vm1218 = vweird.f32 %v937
        %vm1219 = vweird.f32 %v1212
        %vm1220 = vmor %vm1218, %vm1219
        %v1221 = vsel %vm1220, %v1212, %v1217
        %v1222 = vrsqrt.pop %v938
        %v1223 = vmul.f32 %v1222, %v938
        %v1224 = vmul.f32 %v1223, %v1222
        %v1225 = vmul.f32 0.5, %v1224
        %v1226 = vsub.f32 1.5, %v1225
        %v1227 = vmul.f32 %v1222, %v1226
        %vm1228 = vweird.f32 %v938
        %vm1229 = vweird.f32 %v1222
        %vm1230 = vmor %vm1228, %vm1229
        %v1231 = vsel %vm1230, %v1222, %v1227
        %v1232 = vrsqrt.pop %v939
        %v1233 = vmul.f32 %v1232, %v939
        %v1234 = vmul.f32 %v1233, %v1232
        %v1235 = vmul.f32 0.5, %v1234
        %v1236 = vsub.f32 1.5, %v1235
        %v1237 = vmul.f32 %v1232, %v1236
        %vm1238 = vweird.f32 %v939
        %vm1239 = vweird.f32 %v1232
        %vm1240 = vmor %vm1238, %vm1239
        %v1241 = vsel %vm1240, %v1232, %v1237
        %v1242 = vrsqrt.pop %v940
        %v1243 = vmul.f32 %v1242, %v940
        %v1244 = vmul.f32 %v1243, %v1242
        %v1245 = vmul.f32 0.5, %v1244
        %v1246 = vsub.f32 1.5, %v1245
        %v1247 = vmul.f32 %v1242, %v1246
        %vm1248 = vweird.f32 %v940
        %vm1249 = vweird.f32 %v1242
        %vm1250 = vmor %vm1248, %vm1249
        %v1251 = vsel %vm1250, %v1242, %v1247
        %v1252 = vrsqrt.pop %v941
        %v1253 = vmul.f32 %v1252, %v941
        %v1254 = vmul.f32 %v1253, %v1252
        %v1255 = vmul.f32 0.5, %v1254
        %v1256 = vsub.f32 1.5, %v1255
        %v1257 = vmul.f32 %v1252, %v1256
        %vm1258 = vweird.f32 %v941
        %vm1259 = vweird.f32 %v1252
        %vm1260 = vmor %vm1258, %vm1259
        %v1261 = vsel %vm1260, %v1252, %v1257
        %v1262 = vpack.c.bf16 %v737, %v735
        %v1263 = vpack.c.bf16 %v742, %v740
        %v1264 = vpack.c.bf16 %v747, %v745
        %v1265 = vpack.c.bf16 %v752, %v750
        %v1266 = vpack.c.bf16 %v757, %v755
        %v1267 = vpack.c.bf16 %v762, %v760
        %v1268 = vpack.c.bf16 %v767, %v765
        %v1269 = vpack.c.bf16 %v772, %v770
        %v1270 = vpack.c.bf16 %v777, %v775
        %v1271 = vpack.c.bf16 %v782, %v780
        %v1272 = vpack.c.bf16 %v787, %v785
        %v1273 = vpack.c.bf16 %v792, %v790
        %v1274 = vpack.c.bf16 %v797, %v795
        %v1275 = vpack.c.bf16 %v802, %v800
        %v1276 = vpack.c.bf16 %v807, %v805
        %v1277 = vpack.c.bf16 %v812, %v810
        %v1278 = vld [vmem:[#allocation8] sm:$0xf]
        %v1279 = vld [vmem:[#allocation8 + $0x4] sm:$0xf]
        %v1280 = vld [vmem:[#allocation8 + $0x8] sm:$0xf]
        %v1281 = vld [vmem:[#allocation8 + $0xc] sm:$0xf]
        %v1282 = vld [vmem:[#allocation8 + $0x10] sm:$0xf]
        %v1283 = vld [vmem:[#allocation8 + $0x14] sm:$0xf]
        %v1284 = vld [vmem:[#allocation8 + $0x18] sm:$0xf]
        %v1285 = vld [vmem:[#allocation8 + $0x1c] sm:$0xf]
        %v1286 = vld [vmem:[#allocation8 + $0x20] sm:$0xf]
        %v1287 = vld [vmem:[#allocation8 + $0x24] sm:$0xf]
        %v1288 = vld [vmem:[#allocation8 + $0x28] sm:$0xf]
        %v1289 = vld [vmem:[#allocation8 + $0x2c] sm:$0xf]
        %v1290 = vld [vmem:[#allocation8 + $0x30] sm:$0xf]
        %v1291 = vld [vmem:[#allocation8 + $0x34] sm:$0xf]
        %v1292 = vld [vmem:[#allocation8 + $0x38] sm:$0xf]
        %v1293 = vld [vmem:[#allocation8 + $0x3c] sm:$0xf]
        %v1310 = vunpack.c.l.b16 %v1278
        %v1311 = vunpack.c.l.b16 %v1279
        %v1312 = vunpack.c.l.b16 %v1280
        %v1313 = vunpack.c.l.b16 %v1281
        %v1314 = vunpack.c.l.b16 %v1282
        %v1315 = vunpack.c.l.b16 %v1283
        %v1316 = vunpack.c.l.b16 %v1284
        %v1317 = vunpack.c.l.b16 %v1285
        %v1318 = vunpack.c.l.b16 %v1286
        %v1319 = vunpack.c.l.b16 %v1287
        %v1320 = vunpack.c.l.b16 %v1288
        %v1321 = vunpack.c.l.b16 %v1289
        %v1322 = vunpack.c.l.b16 %v1290
        %v1323 = vunpack.c.l.b16 %v1291
        %v1324 = vunpack.c.l.b16 %v1292
        %v1325 = vunpack.c.l.b16 %v1293
        %v1326 = vpack.c.b16 %v1311, %v1310
        %v1327 = vpack.c.b16 %v1313, %v1312
        %v1328 = vpack.c.b16 %v1315, %v1314
        %v1329 = vpack.c.b16 %v1317, %v1316
        %v1330 = vpack.c.b16 %v1319, %v1318
        %v1331 = vpack.c.b16 %v1321, %v1320
        %v1332 = vpack.c.b16 %v1323, %v1322
        %v1333 = vpack.c.b16 %v1325, %v1324
        %1342 = vmatpush.bf16.msra.mxu0 %v1333
        %1343 = vmatpush.bf16.msra.mxu0 %v1332
        %1344 = vmatpush.bf16.msra.mxu0 %v1331
        %1345 = vmatpush.bf16.msra.mxu0 %v1330
        %1346 = vmatpush.bf16.msra.mxu0 %v1329
        %1347 = vmatpush.bf16.msra.mxu0 %v1328
        %1348 = vmatpush.bf16.msra.mxu0 %v1327
        %1349 = vmatpush.bf16.msra.mxu0 %v1326
        %1350 = vmatmul.bf16.gmra.mxu0 %v1262
        %v1351 = vpop.f32.mrf.mxu0
        %v1352 = vadd.f32 0.0, %v1351
        %v1353 = vpop.f32.mrf.mxu0
        %v1354 = vadd.f32 0.0, %v1353
        %1355 = vmatmul.bf16.gmra.mxu0 %v1263
        %v1356 = vpop.f32.mrf.mxu0
        %v1357 = vadd.f32 0.0, %v1356
        %v1358 = vpop.f32.mrf.mxu0
        %v1359 = vadd.f32 0.0, %v1358
        %1360 = vmatmul.bf16.gmra.mxu0 %v1264
        %v1361 = vpop.f32.mrf.mxu0
        %v1362 = vadd.f32 0.0, %v1361
        %v1363 = vpop.f32.mrf.mxu0
        %v1364 = vadd.f32 0.0, %v1363
        %1365 = vmatmul.bf16.gmra.mxu0 %v1265
        %v1366 = vpop.f32.mrf.mxu0
        %v1367 = vadd.f32 0.0, %v1366
        %v1368 = vpop.f32.mrf.mxu0
        %v1369 = vadd.f32 0.0, %v1368
        %1370 = vmatmul.bf16.gmra.mxu0 %v1266
        %v1371 = vpop.f32.mrf.mxu0
        %v1372 = vadd.f32 0.0, %v1371
        %v1373 = vpop.f32.mrf.mxu0
        %v1374 = vadd.f32 0.0, %v1373
        %1375 = vmatmul.bf16.gmra.mxu0 %v1267
        %v1376 = vpop.f32.mrf.mxu0
        %v1377 = vadd.f32 0.0, %v1376
        %v1378 = vpop.f32.mrf.mxu0
        %v1379 = vadd.f32 0.0, %v1378
        %1380 = vmatmul.bf16.gmra.mxu0 %v1268
        %v1381 = vpop.f32.mrf.mxu0
        %v1382 = vadd.f32 0.0, %v1381
        %v1383 = vpop.f32.mrf.mxu0
        %v1384 = vadd.f32 0.0, %v1383
        %1385 = vmatmul.bf16.gmra.mxu0 %v1269
        %v1386 = vpop.f32.mrf.mxu0
        %v1387 = vadd.f32 0.0, %v1386
        %v1388 = vpop.f32.mrf.mxu0
        %v1389 = vadd.f32 0.0, %v1388
        %1390 = vmatmul.bf16.gmra.mxu0 %v1270
        %v1391 = vpop.f32.mrf.mxu0
        %v1392 = vadd.f32 0.0, %v1391
        %v1393 = vpop.f32.mrf.mxu0
        %v1394 = vadd.f32 0.0, %v1393
        %1395 = vmatmul.bf16.gmra.mxu0 %v1271
        %v1396 = vpop.f32.mrf.mxu0
        %v1397 = vadd.f32 0.0, %v1396
        %v1398 = vpop.f32.mrf.mxu0
        %v1399 = vadd.f32 0.0, %v1398
        %1400 = vmatmul.bf16.gmra.mxu0 %v1272
        %v1401 = vpop.f32.mrf.mxu0
        %v1402 = vadd.f32 0.0, %v1401
        %v1403 = vpop.f32.mrf.mxu0
        %v1404 = vadd.f32 0.0, %v1403
        %1405 = vmatmul.bf16.gmra.mxu0 %v1273
        %v1406 = vpop.f32.mrf.mxu0
        %v1407 = vadd.f32 0.0, %v1406
        %v1408 = vpop.f32.mrf.mxu0
        %v1409 = vadd.f32 0.0, %v1408
        %1410 = vmatmul.bf16.gmra.mxu0 %v1274
        %v1411 = vpop.f32.mrf.mxu0
        %v1412 = vadd.f32 0.0, %v1411
        %v1413 = vpop.f32.mrf.mxu0
        %v1414 = vadd.f32 0.0, %v1413
        %1415 = vmatmul.bf16.gmra.mxu0 %v1275
        %v1416 = vpop.f32.mrf.mxu0
        %v1417 = vadd.f32 0.0, %v1416
        %v1418 = vpop.f32.mrf.mxu0
        %v1419 = vadd.f32 0.0, %v1418
        %1420 = vmatmul.bf16.gmra.mxu0 %v1276
        %v1421 = vpop.f32.mrf.mxu0
        %v1422 = vadd.f32 0.0, %v1421
        %v1423 = vpop.f32.mrf.mxu0
        %v1424 = vadd.f32 0.0, %v1423
        %1425 = vmatmul.bf16.gmra.mxu0 %v1277
        %v1426 = vpop.f32.mrf.mxu0
        %v1427 = vadd.f32 0.0, %v1426
        %v1428 = vpop.f32.mrf.mxu0
        %v1429 = vadd.f32 0.0, %v1428
        %1430 = vdwg.mxu0
        %v1431 = vmul.f32 %v1352, %v951
        %v1432 = vmul.f32 %v1354, %v961
        %v1433 = vmul.f32 %v1357, %v971
        %v1434 = vmul.f32 %v1359, %v981
        %v1435 = vmul.f32 %v1362, %v991
        %v1436 = vmul.f32 %v1364, %v1001
        %v1437 = vmul.f32 %v1367, %v1011
        %v1438 = vmul.f32 %v1369, %v1021
        %v1439 = vmul.f32 %v1372, %v1031
        %v1440 = vmul.f32 %v1374, %v1041
        %v1441 = vmul.f32 %v1377, %v1051
        %v1442 = vmul.f32 %v1379, %v1061
        %v1443 = vmul.f32 %v1382, %v1071
        %v1444 = vmul.f32 %v1384, %v1081
        %v1445 = vmul.f32 %v1387, %v1091
        %v1446 = vmul.f32 %v1389, %v1101
        %v1447 = vmul.f32 %v1392, %v1111
        %v1448 = vmul.f32 %v1394, %v1121
        %v1449 = vmul.f32 %v1397, %v1131
        %v1450 = vmul.f32 %v1399, %v1141
        %v1451 = vmul.f32 %v1402, %v1151
        %v1452 = vmul.f32 %v1404, %v1161
        %v1453 = vmul.f32 %v1407, %v1171
        %v1454 = vmul.f32 %v1409, %v1181
        %v1455 = vmul.f32 %v1412, %v1191
        %v1456 = vmul.f32 %v1414, %v1201
        %v1457 = vmul.f32 %v1417, %v1211
        %v1458 = vmul.f32 %v1419, %v1221
        %v1459 = vmul.f32 %v1422, %v1231
        %v1460 = vmul.f32 %v1424, %v1241
        %v1461 = vmul.f32 %v1427, %v1251
        %v1462 = vmul.f32 %v1429, %v1261
        %1463 = vst [vmem:[%s321] sm:$0xff] %v1431
        %1464 = vst [vmem:[%s321 + $0x8] sm:$0xff] %v1432
        %1465 = vst [vmem:[%s321 + $0x10] sm:$0xff] %v1433
        %1466 = vst [vmem:[%s321 + $0x18] sm:$0xff] %v1434
        %1467 = vst [vmem:[%s321 + $0x20] sm:$0xff] %v1435
        %1468 = vst [vmem:[%s321 + $0x28] sm:$0xff] %v1436
        %1469 = vst [vmem:[%s321 + $0x30] sm:$0xff] %v1437
        %1470 = vst [vmem:[%s321 + $0x38] sm:$0xff] %v1438
        %1471 = vst [vmem:[%s321 + $0x40] sm:$0xff] %v1439
        %1472 = vst [vmem:[%s321 + $0x48] sm:$0xff] %v1440
        %1473 = vst [vmem:[%s321 + $0x50] sm:$0xff] %v1441
        %1474 = vst [vmem:[%s321 + $0x58] sm:$0xff] %v1442
        %1475 = vst [vmem:[%s321 + $0x60] sm:$0xff] %v1443
        %1476 = vst [vmem:[%s321 + $0x68] sm:$0xff] %v1444
        %1477 = vst [vmem:[%s321 + $0x70] sm:$0xff] %v1445
        %1478 = vst [vmem:[%s321 + $0x78] sm:$0xff] %v1446
        %1479 = vst [vmem:[%s321 + $0x80] sm:$0xff] %v1447
        %1480 = vst [vmem:[%s321 + $0x88] sm:$0xff] %v1448
        %1481 = vst [vmem:[%s321 + $0x90] sm:$0xff] %v1449
        %1482 = vst [vmem:[%s321 + $0x98] sm:$0xff] %v1450
        %1483 = vst [vmem:[%s321 + $0xa0] sm:$0xff] %v1451
        %1484 = vst [vmem:[%s321 + $0xa8] sm:$0xff] %v1452
        %1485 = vst [vmem:[%s321 + $0xb0] sm:$0xff] %v1453
        %1486 = vst [vmem:[%s321 + $0xb8] sm:$0xff] %v1454
        %1487 = vst [vmem:[%s321 + $0xc0] sm:$0xff] %v1455
        %1488 = vst [vmem:[%s321 + $0xc8] sm:$0xff] %v1456
        %1489 = vst [vmem:[%s321 + $0xd0] sm:$0xff] %v1457
        %1490 = vst [vmem:[%s321 + $0xd8] sm:$0xff] %v1458
        %1491 = vst [vmem:[%s321 + $0xe0] sm:$0xff] %v1459
        %1492 = vst [vmem:[%s321 + $0xe8] sm:$0xff] %v1460
        %1493 = vst [vmem:[%s321 + $0xf0] sm:$0xff] %v1461
        %1494 = vst [vmem:[%s321 + $0xf8] sm:$0xff] %v1462
        %s1495 = sand.u32 %s164, 1
        %s1496 = scalar_lea.sflag [#allocation4], %s1495
        %s1497 = sand.u32 %s164, 1
        %s1498 = smul.addr %s1497, 256
        %s1499 = scalar_lea.vmem [#allocation10], %s1498
        // Predicated region
        $region61: #{tpu_custom_call.1} parent=43 // pred_check
          %p1500 = pneg %p174
        $region62: #{tpu_custom_call.1} parent=43 // pred_check_branch
          %1502 = sbr.rel (%p1500) target = $region64
        $region63: #{tpu_custom_call.1} parent=43 // pred_region
          %s1503 = smul.u32 32, %s25
          %1505 = vsyncadd %s1496, 0
          %s1506 = smul.addr %s1503, 8
          %s1507 = scalar_lea.hbm %s6, %s1506
          %s1508 = sshll.u32 %s1499, 4
          %s1509 = int_to_ptr.vmem [resolvable:$true] %s1508
          %s1510 = sshll.u32 %s1507, 4
          %s1511 = int_to_ptr.hbm [resolvable:$true] %s1510
          %1516 = dma.vmem_to_hbm [thread:$0]  %s1509, 4096, %s1511, %s1496, 128, 128, 8
        $region64: #{tpu_custom_call.1} parent=43 // pred_fallthru
          _
      $region44: #{tpu_custom_call.1} parent=5 // pred_fallthru
        _
      %p1517 = scmp.le.s32.totalorder 2, %s20
      // Predicated region
      $region65: #{tpu_custom_call.1} parent=5 // pred_check
        %p1518 = pneg %p1517
      $region66: #{tpu_custom_call.1} parent=5 // pred_check_branch
        %1520 = sbr.rel (%p1518) target = $region68
      $region67: #{tpu_custom_call.1} parent=5 // pred_region
        %s1521 = ssub.s32 %s20, 2
        // Predicated region
        $region69: #{tpu_custom_call.1} parent=67 // pred_check
          %p1522 = pneg %p180
        $region70: #{tpu_custom_call.1} parent=67 // pred_check_branch
          %1524 = sbr.rel (%p1522) target = $region72
        $region71: #{tpu_custom_call.1} parent=67 // pred_region
          %s1525 = sand.u32 %s165, 1
          %s1526 = scalar_lea.sflag [#allocation4], %s1525
          %s1527 = sand.u32 %s165, 1
          %s1528 = smul.addr %s1527, 256
          %s1529 = scalar_lea.vmem [#allocation10], %s1528
          %1531 = dma.done %s1526, 4096
        $region72: #{tpu_custom_call.1} parent=67 // pred_fallthru
          _
      $region68: #{tpu_custom_call.1} parent=5 // pred_fallthru
        _
    $region6: #{tpu_custom_call.1} parent=1 // loop_footer
      %s24 = sadd.s32 1, %s20
    $region7: #{tpu_custom_call.1} parent=1 // loop_footer_branch
      %19 = sbr.rel target = $region3
    $region8: #{tpu_custom_call.1} parent=1 // loop_exit
      _
    %1532 = vsyncpa [#allocation3], 1
    %s1533 = scalar_lea.sflag [#allocation3], 1
    %1534 = vsyncpa %s1533, 1
    %1535 = vsyncpa [#allocation6], 1
    %1536 = vsyncpa [#allocation9], 1
    %1537 = vsyncpa [#allocation4], 1
    %s1538 = scalar_lea.sflag [#allocation4], 1
    %1539 = vsyncpa %s1538, 1

</llo_original>
